<compile_context>
chip_gen: v7x
topology: tpu7x:2x2x1
jax: 0.10.0
libtpu: 0.0.40
codegen_flags: <defaults>
</compile_context>

<pallas_src>
import functools
import math

import jax
import jax.numpy as jnp
from jax.experimental import pallas as pl
from jax.experimental.pallas import tpu as pltpu

DROPOUT_P = 0.7
KEEP_SCALE = 1.0 / (1.0 - DROPOUT_P)


def _attn_dropout_kernel(q_ref, k_ref, v_ref, mask_ref, u_ref, o_ref, *, inv_sqrt_d):
    q = q_ref[...]          # (HB, S, Dp) f32
    k = k_ref[...]          # (HB, S, Dp) f32
    v = v_ref[...]          # (HB, S, Dp) f32
    m = mask_ref[...]       # (S, S)      f32, read once, broadcast over heads

    # scores = q @ k^T / sqrt(d) + mask  (contraction on last dim -> no .T)
    s = jnp.einsum("hqd,hkd->hqk", q, k, preferred_element_type=jnp.float32)
    s = s * inv_sqrt_d + m[None, :, :]

    # softmax over keys
    s_max = jnp.max(s, axis=-1, keepdims=True)
    p = jnp.exp(s - s_max)
    denom = jnp.sum(p, axis=-1, keepdims=True)
    w = p * pl.reciprocal(denom, approx=True)

    # dropout(p=0.7, train=True): keep with prob 0.3, scale survivors by 1/0.3
    keep = u_ref[...] >= DROPOUT_P
    w = jnp.where(keep, w * KEEP_SCALE, 0.0)

    # output = attn_weight @ v  (Dp=128 -> lane-dense, unmasked stores)
    o_ref[...] = jnp.einsum(
        "hqk,hkd->hqd", w, v, preferred_element_type=jnp.float32
    ).astype(o_ref.dtype)


def attention_dropout(query, key, value, attn_mask, seed=0, heads_per_block=None):
    """query/key/value: (1, H, S, D) float32; attn_mask: (1, 1, S, S) float32."""
    B, H, S, D = query.shape
    assert B == 1 and attn_mask.shape[-2:] == (S, S)

    # Lane-dense padding of the head dim (15 -> 128). Zero pad is exact for
    # q@k^T (zeros contribute nothing) and padded output columns are sliced off.
    Dp = max(128, ((D + 127) // 128) * 128)
    pad = [(0, 0), (0, 0), (0, 0), (0, Dp - D)]
    q = jnp.pad(query, pad).reshape(H, S, Dp)
    k = jnp.pad(key, pad).reshape(H, S, Dp)
    v = jnp.pad(value, pad).reshape(H, S, Dp)
    mask = attn_mask.reshape(S, S).astype(jnp.float32)

    # Dropout randomness generated once host/XLA-side (in-kernel HW PRNG has no
    # CPU-interpret lowering); one f32 compare per element inside the kernel.
    u = jax.random.uniform(jax.random.PRNGKey(seed), (H, S, S), dtype=jnp.float32)

    if heads_per_block is None:
        # 2 grid steps: heads mostly fused (minimal per-step overhead) while
        # keeping a parallel axis for the v7x megacore to shard across 2 TCs.
        heads_per_block = max(1, H // 2)
    assert H % heads_per_block == 0
    HB = heads_per_block
    grid = (H // HB,)

    # NOTE: the full (S,S) score block per step assumes S is small enough to sit
    # in VMEM (true for the demo shapes); S=2048 would want flash-style KV tiling.
    kernel = functools.partial(_attn_dropout_kernel, inv_sqrt_d=1.0 / math.sqrt(D))

    out = pl.pallas_call(
        kernel,
        out_shape=jax.ShapeDtypeStruct((H, S, Dp), query.dtype),
        grid=grid,
        in_specs=[
            pl.BlockSpec((HB, S, Dp), lambda i: (i, 0, 0)),
            pl.BlockSpec((HB, S, Dp), lambda i: (i, 0, 0)),
            pl.BlockSpec((HB, S, Dp), lambda i: (i, 0, 0)),
            pl.BlockSpec((S, S), lambda i: (0, 0)),
            pl.BlockSpec((HB, S, S), lambda i: (i, 0, 0)),
        ],
        out_specs=pl.BlockSpec((HB, S, Dp), lambda i: (i, 0, 0)),
        compiler_params=pltpu.CompilerParams(
            dimension_semantics=("parallel",),
        ),
    )(q, k, v, mask, u)

    return out[:, :, :D].reshape(B, H, S, D)


if __name__ == "__main__":
    # Small shapes consistent with the module: B=1, H=8, S=128, D=15.
    B, H, S, D = 1, 8, 128, 15
    root = jax.random.PRNGKey(0)
    kq, kk, kv, km = jax.random.split(root, 4)

    query = jax.random.normal(kq, (B, H, S, D), dtype=jnp.float32)
    key = jax.random.normal(kk, (B, H, S, D), dtype=jnp.float32)
    value = jax.random.normal(kv, (B, H, S, D), dtype=jnp.float32)
    attn_mask = jax.random.normal(km, (1, 1, S, S), dtype=jnp.float32)

    out = attention_dropout(query, key, value, attn_mask, seed=0)
    jax.block_until_ready(out)
    assert out.shape == (B, H, S, D)
    print("KERNEL_OK")
</pallas_src>

<mosaic_0001>
module attributes {stable_mosaic.version = 11 : i64} {
  func.func @_attn_dropout_kernel(%arg0: i32, %arg1: memref<4x128x128xf32, #tpu.memory_space<vmem>>, %arg2: memref<4x128x128xf32, #tpu.memory_space<vmem>>, %arg3: memref<4x128x128xf32, #tpu.memory_space<vmem>>, %arg4: memref<128x128xf32, #tpu.memory_space<vmem>>, %arg5: memref<4x128x128xf32, #tpu.memory_space<vmem>>, %arg6: memref<4x128x128xf32, #tpu.memory_space<vmem>>) attributes {dimension_semantics = [#tpu.dimension_semantics<parallel>], iteration_bounds = array<i64: 2>, scalar_prefetch = 0 : i64, scratch_operands = 0 : i64, tpu.core_type = #tpu.core_type<tc>, window_params = [{transform_indices = @transform_0, window_bounds = array<i64: 4, 128, 128>}, {transform_indices = @transform_1, window_bounds = array<i64: 4, 128, 128>}, {transform_indices = @transform_2, window_bounds = array<i64: 4, 128, 128>}, {pipeline_mode = #tpu.pipeline_mode<synchronous>, transform_indices = @transform_3, window_bounds = array<i64: 128, 128>}, {transform_indices = @transform_4, window_bounds = array<i64: 4, 128, 128>}, {transform_indices = @transform_5, window_bounds = array<i64: 4, 128, 128>}]} {
    %c0 = arith.constant 0 : index
    %c0_0 = arith.constant 0 : index
    %c0_1 = arith.constant 0 : index
    %0 = vector.load %arg1[%c0, %c0_0, %c0_1] : memref<4x128x128xf32, #tpu.memory_space<vmem>>, vector<4x128x128xf32>
    %c0_2 = arith.constant 0 : index
    %c0_3 = arith.constant 0 : index
    %c0_4 = arith.constant 0 : index
    %1 = vector.load %arg2[%c0_2, %c0_3, %c0_4] : memref<4x128x128xf32, #tpu.memory_space<vmem>>, vector<4x128x128xf32>
    %c0_5 = arith.constant 0 : index
    %c0_6 = arith.constant 0 : index
    %c0_7 = arith.constant 0 : index
    %2 = vector.load %arg3[%c0_5, %c0_6, %c0_7] : memref<4x128x128xf32, #tpu.memory_space<vmem>>, vector<4x128x128xf32>
    %c0_8 = arith.constant 0 : index
    %c0_9 = arith.constant 0 : index
    %3 = vector.load %arg4[%c0_8, %c0_9] : memref<128x128xf32, #tpu.memory_space<vmem>>, vector<128x128xf32>
    "tpu.trace_start"() <{level = 10 : i32, message = "hqd,hkd->hqk"}> : () -> ()
    %cst = arith.constant dense<0.000000e+00> : vector<4x128x128xf32>
    %4 = tpu.matmul %0, %1, %cst {dimension_numbers = #tpu.dot_dimension_numbers<[2], [2], [1], [1], [0, 0, 0, 1, 1, 1], [0], [0]>} : vector<4x128x128xf32>, vector<4x128x128xf32>, vector<4x128x128xf32> -> vector<4x128x128xf32>
    "tpu.trace_stop"() : () -> ()
    %cst_10 = arith.constant 0.258198887 : f32
    %5 = vector.broadcast %cst_10 : f32 to vector<4x128x128xf32>
    %6 = arith.mulf %4, %5 : vector<4x128x128xf32>
    %7 = vector.shape_cast %3 : vector<128x128xf32> to vector<1x128x128xf32>
    %8 = vector.broadcast %7 : vector<1x128x128xf32> to vector<4x128x128xf32>
    %9 = arith.addf %6, %8 : vector<4x128x128xf32>
    %cst_11 = arith.constant dense<0xFF800000> : vector<4x128xf32>
    %10 = vector.multi_reduction <maximumf>, %9, %cst_11 [2] : vector<4x128x128xf32> to vector<4x128xf32>
    %11 = vector.shape_cast %10 : vector<4x128xf32> to vector<4x128x1xf32>
    %12 = vector.broadcast %11 : vector<4x128x1xf32> to vector<4x128x128xf32>
    %13 = arith.subf %9, %12 : vector<4x128x128xf32>
    %14 = math.exp %13 : vector<4x128x128xf32>
    %cst_12 = arith.constant dense<0.000000e+00> : vector<4x128xf32>
    %15 = vector.multi_reduction <add>, %14, %cst_12 [2] : vector<4x128x128xf32> to vector<4x128xf32>
    %16 = vector.shape_cast %15 : vector<4x128xf32> to vector<4x128x1xf32>
    %17 = tpu.reciprocal %16 {approx = true} : vector<4x128x1xf32> -> vector<4x128x1xf32>
    %18 = vector.broadcast %17 : vector<4x128x1xf32> to vector<4x128x128xf32>
    %19 = arith.mulf %14, %18 : vector<4x128x128xf32>
    %c0_13 = arith.constant 0 : index
    %c0_14 = arith.constant 0 : index
    %c0_15 = arith.constant 0 : index
    %20 = vector.load %arg5[%c0_13, %c0_14, %c0_15] : memref<4x128x128xf32, #tpu.memory_space<vmem>>, vector<4x128x128xf32>
    %cst_16 = arith.constant 0.699999988 : f32
    %21 = vector.broadcast %cst_16 : f32 to vector<4x128x128xf32>
    %22 = arith.cmpf oge, %20, %21 : vector<4x128x128xf32>
    %cst_17 = arith.constant 3.33333325 : f32
    %23 = vector.broadcast %cst_17 : f32 to vector<4x128x128xf32>
    %24 = arith.mulf %19, %23 : vector<4x128x128xf32>
    %cst_18 = arith.constant 0.000000e+00 : f32
    %25 = vector.broadcast %cst_18 : f32 to vector<4x128x128xf32>
    %26 = arith.select %22, %24, %25 : vector<4x128x128xi1>, vector<4x128x128xf32>
    "tpu.trace_start"() <{level = 10 : i32, message = "hqk,hkd->hqd"}> : () -> ()
    %cst_19 = arith.constant dense<0.000000e+00> : vector<4x128x128xf32>
    %27 = tpu.matmul %26, %2, %cst_19 {dimension_numbers = #tpu.dot_dimension_numbers<[2], [1], [1], [2], [0, 0, 0, 1, 1, 2], [0], [0]>} : vector<4x128x128xf32>, vector<4x128x128xf32>, vector<4x128x128xf32> -> vector<4x128x128xf32>
    "tpu.trace_stop"() : () -> ()
    %c0_20 = arith.constant 0 : index
    %c0_21 = arith.constant 0 : index
    %c0_22 = arith.constant 0 : index
    %28 = vector.load %arg6[%c0_20, %c0_21, %c0_22] : memref<4x128x128xf32, #tpu.memory_space<vmem>>, vector<4x128x128xf32>
    tpu.vector_store %arg6[%c0_20, %c0_21, %c0_22], %27 {strides = array<i32>} : memref<4x128x128xf32, #tpu.memory_space<vmem>>, vector<4x128x128xf32>,
    return
  }
  func.func @transform_0(%arg0: i32) -> (i32, i32, i32) {
    %c0_i32 = arith.constant 0 : i32
    %c0_i32_0 = arith.constant 0 : i32
    %c0_i32_1 = arith.constant 0 : i32
    return %arg0, %c0_i32, %c0_i32_0 : i32, i32, i32
  }
  func.func @transform_1(%arg0: i32) -> (i32, i32, i32) {
    %c0_i32 = arith.constant 0 : i32
    %c0_i32_0 = arith.constant 0 : i32
    %c0_i32_1 = arith.constant 0 : i32
    return %arg0, %c0_i32, %c0_i32_0 : i32, i32, i32
  }
  func.func @transform_2(%arg0: i32) -> (i32, i32, i32) {
    %c0_i32 = arith.constant 0 : i32
    %c0_i32_0 = arith.constant 0 : i32
    %c0_i32_1 = arith.constant 0 : i32
    return %arg0, %c0_i32, %c0_i32_0 : i32, i32, i32
  }
  func.func @transform_3(%arg0: i32) -> (i32, i32) {
    %c0_i32 = arith.constant 0 : i32
    %c0_i32_0 = arith.constant 0 : i32
    %c0_i32_1 = arith.constant 0 : i32
    return %c0_i32, %c0_i32_0 : i32, i32
  }
  func.func @transform_4(%arg0: i32) -> (i32, i32, i32) {
    %c0_i32 = arith.constant 0 : i32
    %c0_i32_0 = arith.constant 0 : i32
    %c0_i32_1 = arith.constant 0 : i32
    return %arg0, %c0_i32, %c0_i32_0 : i32, i32, i32
  }
  func.func @transform_5(%arg0: i32) -> (i32, i32, i32) {
    %c0_i32 = arith.constant 0 : i32
    %c0_i32_0 = arith.constant 0 : i32
    %c0_i32_1 = arith.constant 0 : i32
    return %arg0, %c0_i32, %c0_i32_0 : i32, i32, i32
  }
}

</mosaic_0001>

<llo_original>
// kernel: tpu_custom_call.1
$region0: #{tpu_custom_call.1}
  #allocation0 [shape = 'u32[]', space=smem, size = 0x4, offset = 0x4, fixed_abs, tag = 'smem constant byte address 0x4 - core index']
  #allocation1 [shape = 'u32[144,128]{1,0:T(1,128)}', space=vmem, size = 0x12000, scoped, tag = 'internal scratch']
  %s0 = inlined_call_operand.hbm [shape: f32[8,128,128], index: 0, kind: input, shape index: {}]
  %s1 = inlined_call_operand.hbm [shape: f32[8,128,128], index: 1, kind: input, shape index: {}]
  %s2 = inlined_call_operand.hbm [shape: f32[8,128,128], index: 2, kind: input, shape index: {}]
  %s3 = inlined_call_operand.hbm [shape: f32[128,128], index: 3, kind: input, shape index: {}]
  %s4 = inlined_call_operand.hbm [shape: f32[8,128,128], index: 4, kind: input, shape index: {}]
  %s5 = inlined_call_operand.hbm [shape: f32[8,128,128], index: 5, kind: output, shape index: {}]
  %s6 = sld [smem:[#allocation0]]
  $region73: #{tpu_custom_call.1} parent=0
    _
  %s8 = ssub.s32 1, %s6
  %s9 = scalar_select 0, %s8, %s6
  $region1: #{tpu_custom_call.1} parent=0
    #allocation2 [shape = 'u8[524288]{0}', space=vmem, size = 0x80000, scoped, tag = 'input window, operand 0']
    #allocation3 [shape = 's32[2]{0}', space=sflag, size = 0x8, scoped, tag = 'scoped memory for tpu_custom_call.1']
    #allocation4 [shape = 's32[2]{0}', space=sflag, size = 0x8, scoped, tag = 'scoped memory for tpu_custom_call.1']
    #allocation5 [shape = 'u8[524288]{0}', space=vmem, size = 0x80000, scoped, tag = 'input window, operand 1']
    #allocation6 [shape = 's32[2]{0}', space=sflag, size = 0x8, scoped, tag = 'scoped memory for tpu_custom_call.1']
    #allocation7 [shape = 'u8[524288]{0}', space=vmem, size = 0x80000, scoped, tag = 'input window, operand 2']
    #allocation8 [shape = 'u8[65536]{0}', space=vmem, size = 0x10000, scoped, tag = 'input window, operand 3, single buffered']
    #allocation9 [shape = 's32[1]{0}', space=sflag, size = 0x4, scoped, tag = 'scoped memory for tpu_custom_call.1']
    #allocation10 [shape = 'u8[524288]{0}', space=vmem, size = 0x80000, scoped, tag = 'input window, operand 4']
    #allocation11 [shape = 'u8[524288]{0}', space=vmem, size = 0x80000, scoped, tag = 'output window, operand 0']
    %10 = vsyncpa [#allocation3], 0
    %s11 = scalar_lea.sflag [#allocation3], 1
    %12 = vsyncpa %s11, 0
    %13 = vsyncpa [#allocation6], 0
    %s14 = scalar_lea.sflag [#allocation6], 1
    %15 = vsyncpa %s14, 0
    %16 = vsyncpa [#allocation9], 0
    %17 = vsyncpa [#allocation4], 0
    %s18 = scalar_lea.sflag [#allocation4], 1
    %19 = vsyncpa %s18, 0
    loop: start=0, step=1, limit=4
    $region2: #{tpu_custom_call.1} parent=1 // loop_pre_header
      _
    $region3: #{tpu_custom_call.1} parent=1 // loop_header
      %s21 = sphi 0, %s25
      %p22 = scmp.ge.s32.totalorder %s21, 4
      %s31 = sphi 0, %s33
      %s34 = sphi 0, %s31
      %s35 = sphi 0, %s34
      %s51 = sphi 0, %s35
      %s57 = sphi 0, %s59
      %s60 = sphi 0, %s57
      %s61 = sphi 0, %s60
      %s77 = sphi 0, %s61
      %s83 = sphi 0, %s85
      %s86 = sphi 0, %s83
      %s87 = sphi 0, %s86
      %s103 = sphi 0, %s87
      %s107 = sphi 0, %s107
      %s109 = sphi 0, %s107
      %s110 = sphi 0, %s109
      %s124 = sphi 0, %s110
      %s130 = sphi 0, %s132
      %s133 = sphi 0, %s130
      %s134 = sphi 0, %s133
      %s150 = sphi 0, %s134
      %s156 = sphi 0, %s158
      %s159 = sphi 0, %s156
      %s160 = sphi 0, %s159
      %s176 = sphi 0, %s160
    $region4: #{tpu_custom_call.1} parent=1 // loop_header_branch
      %24 = sbr.rel (%p22) target = $region8
    $region5: #{tpu_custom_call.1} parent=1 // loop_body
      %s26 = ssub.s32 %s21, 1
      %s27 = ssub.s32 %s21, 2
      %s28 = sadd.s32 %s21, 1
      %s29 = ssub.s32 %s21, %s28
      %p30 = scmp.eq.s32.totalorder %s29, 0
      %s32 = sadd.s32 %s31, 1
      %s33 = scalar_select %p30, %s31, %s32
      %p36 = pneg %p30
      %p37 = scmp.eq.s32.totalorder %s21, 1
      %p38 = por %p36, %p37
      %p39 = scmp.ne.s32.totalorder %s31, %s34
      %p40 = scmp.eq.s32.totalorder %s21, 0
      %p41 = por %p39, %p40
      %p42 = scmp.ne.s32.totalorder %s31, %s34
      %p43 = scmp.eq.s32.totalorder %s26, 1
      %p44 = por %p42, %p43
      %p45 = scmp.ne.s32.totalorder %s34, %s35
      %p46 = scmp.eq.s32.totalorder %s26, 0
      %p47 = por %p45, %p46
      %p48 = scmp.ne.s32.totalorder %s34, %s35
      %p49 = scmp.eq.s32.totalorder %s27, 1
      %p50 = por %p48, %p49
      %p52 = scmp.ne.s32.totalorder %s35, %s51
      %p53 = scmp.eq.s32.totalorder %s27, 0
      %p54 = por %p52, %p53
      %s55 = ssub.s32 %s21, %s28
      %p56 = scmp.eq.s32.totalorder %s55, 0
      %s58 = sadd.s32 %s57, 1
      %s59 = scalar_select %p56, %s57, %s58
      %p62 = pneg %p56
      %p63 = scmp.eq.s32.totalorder %s21, 1
      %p64 = por %p62, %p63
      %p65 = scmp.ne.s32.totalorder %s57, %s60
      %p66 = scmp.eq.s32.totalorder %s21, 0
      %p67 = por %p65, %p66
      %p68 = scmp.ne.s32.totalorder %s57, %s60
      %p69 = scmp.eq.s32.totalorder %s26, 1
      %p70 = por %p68, %p69
      %p71 = scmp.ne.s32.totalorder %s60, %s61
      %p72 = scmp.eq.s32.totalorder %s26, 0
      %p73 = por %p71, %p72
      %p74 = scmp.ne.s32.totalorder %s60, %s61
      %p75 = scmp.eq.s32.totalorder %s27, 1
      %p76 = por %p74, %p75
      %p78 = scmp.ne.s32.totalorder %s61, %s77
      %p79 = scmp.eq.s32.totalorder %s27, 0
      %p80 = por %p78, %p79
      %s81 = ssub.s32 %s21, %s28
      %p82 = scmp.eq.s32.totalorder %s81, 0
      %s84 = sadd.s32 %s83, 1
      %s85 = scalar_select %p82, %s83, %s84
      %p88 = pneg %p82
      %p89 = scmp.eq.s32.totalorder %s21, 1
      %p90 = por %p88, %p89
      %p91 = scmp.ne.s32.totalorder %s83, %s86
      %p92 = scmp.eq.s32.totalorder %s21, 0
      %p93 = por %p91, %p92
      %p94 = scmp.ne.s32.totalorder %s83, %s86
      %p95 = scmp.eq.s32.totalorder %s26, 1
      %p96 = por %p94, %p95
      %p97 = scmp.ne.s32.totalorder %s86, %s87
      %p98 = scmp.eq.s32.totalorder %s26, 0
      %p99 = por %p97, %p98
      %p100 = scmp.ne.s32.totalorder %s86, %s87
      %p101 = scmp.eq.s32.totalorder %s27, 1
      %p102 = por %p100, %p101
      %p104 = scmp.ne.s32.totalorder %s87, %s103
      %p105 = scmp.eq.s32.totalorder %s27, 0
      %p106 = por %p104, %p105
      %s108 = sadd.s32 %s107, 1
      %p111 = scmp.eq.s32.totalorder %s21, 1
      %p112 = scmp.ne.s32.totalorder %s107, %s109
      %p113 = scmp.eq.s32.totalorder %s21, 0
      %p114 = por %p112, %p113
      %p115 = scmp.ne.s32.totalorder %s107, %s109
      %p116 = scmp.eq.s32.totalorder %s26, 1
      %p117 = por %p115, %p116
      %p118 = scmp.ne.s32.totalorder %s109, %s110
      %p119 = scmp.eq.s32.totalorder %s26, 0
      %p120 = por %p118, %p119
      %p121 = scmp.ne.s32.totalorder %s109, %s110
      %p122 = scmp.eq.s32.totalorder %s27, 1
      %p123 = por %p121, %p122
      %p125 = scmp.ne.s32.totalorder %s110, %s124
      %p126 = scmp.eq.s32.totalorder %s27, 0
      %p127 = por %p125, %p126
      %s128 = ssub.s32 %s21, %s28
      %p129 = scmp.eq.s32.totalorder %s128, 0
      %s131 = sadd.s32 %s130, 1
      %s132 = scalar_select %p129, %s130, %s131
      %p135 = pneg %p129
      %p136 = scmp.eq.s32.totalorder %s21, 1
      %p137 = por %p135, %p136
      %p138 = scmp.ne.s32.totalorder %s130, %s133
      %p139 = scmp.eq.s32.totalorder %s21, 0
      %p140 = por %p138, %p139
      %p141 = scmp.ne.s32.totalorder %s130, %s133
      %p142 = scmp.eq.s32.totalorder %s26, 1
      %p143 = por %p141, %p142
      %p144 = scmp.ne.s32.totalorder %s133, %s134
      %p145 = scmp.eq.s32.totalorder %s26, 0
      %p146 = por %p144, %p145
      %p147 = scmp.ne.s32.totalorder %s133, %s134
      %p148 = scmp.eq.s32.totalorder %s27, 1
      %p149 = por %p147, %p148
      %p151 = scmp.ne.s32.totalorder %s134, %s150
      %p152 = scmp.eq.s32.totalorder %s27, 0
      %p153 = por %p151, %p152
      %s154 = ssub.s32 %s21, %s28
      %p155 = scmp.eq.s32.totalorder %s154, 0
      %s157 = sadd.s32 %s156, 1
      %s158 = scalar_select %p155, %s156, %s157
      %p161 = pneg %p155
      %p162 = scmp.eq.s32.totalorder %s21, 1
      %p163 = por %p161, %p162
      %p164 = scmp.ne.s32.totalorder %s156, %s159
      %p165 = scmp.eq.s32.totalorder %s21, 0
      %p166 = por %p164, %p165
      %p167 = scmp.ne.s32.totalorder %s156, %s159
      %p168 = scmp.eq.s32.totalorder %s26, 1
      %p169 = por %p167, %p168
      %p170 = scmp.ne.s32.totalorder %s159, %s160
      %p171 = scmp.eq.s32.totalorder %s26, 0
      %p172 = por %p170, %p171
      %p173 = scmp.ne.s32.totalorder %s159, %s160
      %p174 = scmp.eq.s32.totalorder %s27, 1
      %p175 = por %p173, %p174
      %p177 = scmp.ne.s32.totalorder %s160, %s176
      %p178 = scmp.eq.s32.totalorder %s27, 0
      %p179 = por %p177, %p178
      %p180 = scmp.le.s32.totalorder 1, %s21
      %p181 = scmp.lt.s32.totalorder %s21, 3
      %p182 = pnand %p180, %p181
      %p183 = pneg %p182
      // Predicated region
      $region9: #{tpu_custom_call.1} parent=5 // pred_check
        _
      $region10: #{tpu_custom_call.1} parent=5 // pred_check_branch
        %185 = sbr.rel (%p182) target = $region12
      $region11: #{tpu_custom_call.1} parent=5 // pred_region
        %s186 = ssub.s32 %s21, 1
        // Predicated region
        $region13: #{tpu_custom_call.1} parent=11 // pred_check
          %p187 = pneg %p120
        $region14: #{tpu_custom_call.1} parent=11 // pred_check_branch
          %189 = sbr.rel (%p187) target = $region16
        $region15: #{tpu_custom_call.1} parent=11 // pred_region
          %s191 = ssub.s32 2048, 2048
          %192 = vsyncadd [#allocation9], %s191
          %s193 = sshll.u32 [#allocation8], 4
          %s194 = int_to_ptr.vmem [resolvable:$true] %s193
          %199 = dma.hbm_to_vmem [thread:$0]  %s3, 2048, %s194, [#allocation9], 128, 128, 8
        $region16: #{tpu_custom_call.1} parent=11 // pred_fallthru
          _
      $region12: #{tpu_custom_call.1} parent=5 // pred_fallthru
        _
      %p200 = scmp.lt.s32.totalorder %s21, 2
      // Predicated region
      $region17: #{tpu_custom_call.1} parent=5 // pred_check
        %p201 = pneg %p200
      $region18: #{tpu_custom_call.1} parent=5 // pred_check_branch
        %203 = sbr.rel (%p201) target = $region20
      $region19: #{tpu_custom_call.1} parent=5 // pred_region
        // Predicated region
        $region21: #{tpu_custom_call.1} parent=19 // pred_check
          %p204 = pneg %p41
        $region22: #{tpu_custom_call.1} parent=19 // pred_check_branch
          %206 = sbr.rel (%p204) target = $region24
        $region23: #{tpu_custom_call.1} parent=19 // pred_region
          %s207 = sand.u32 %s21, 1
          %s208 = scalar_lea.sflag [#allocation3], %s207
          %s209 = sand.u32 %s31, 1
          %s210 = smul.addr %s209, 512
          %s211 = scalar_lea.vmem [#allocation2], %s210
          %s212 = smul.u32 4, %s21
          %s214 = ssub.s32 8192, 8192
          %215 = vsyncadd %s208, %s214
          %s216 = smul.addr %s212, 16
          %s217 = smul.addr %s216, 128
          %s218 = scalar_lea.hbm %s0, %s217
          %s219 = sshll.u32 %s211, 4
          %s220 = int_to_ptr.vmem [resolvable:$true] %s219
          %225 = dma.hbm_to_vmem [thread:$0]  %s218, 8192, %s220, %s208, 128, 128, 8
        $region24: #{tpu_custom_call.1} parent=19 // pred_fallthru
          _
        // Predicated region
        $region25: #{tpu_custom_call.1} parent=19 // pred_check
          %p226 = pneg %p67
        $region26: #{tpu_custom_call.1} parent=19 // pred_check_branch
          %228 = sbr.rel (%p226) target = $region28
        $region27: #{tpu_custom_call.1} parent=19 // pred_region
          %s229 = sand.u32 %s21, 1
          %s230 = scalar_lea.sflag [#allocation6], %s229
          %s231 = sand.u32 %s57, 1
          %s232 = smul.addr %s231, 512
          %s233 = scalar_lea.vmem [#allocation5], %s232
          %s234 = smul.u32 4, %s21
          %s236 = ssub.s32 8192, 8192
          %237 = vsyncadd %s230, %s236
          %s238 = smul.addr %s234, 16
          %s239 = smul.addr %s238, 128
          %s240 = scalar_lea.hbm %s1, %s239
          %s241 = sshll.u32 %s233, 4
          %s242 = int_to_ptr.vmem [resolvable:$true] %s241
          %247 = dma.hbm_to_vmem [thread:$0]  %s240, 8192, %s242, %s230, 128, 128, 8
        $region28: #{tpu_custom_call.1} parent=19 // pred_fallthru
          _
        // Predicated region
        $region29: #{tpu_custom_call.1} parent=19 // pred_check
          %p248 = pneg %p93
        $region30: #{tpu_custom_call.1} parent=19 // pred_check_branch
          %250 = sbr.rel (%p248) target = $region32
        $region31: #{tpu_custom_call.1} parent=19 // pred_region
          %s251 = sand.u32 %s21, 1
          %s252 = scalar_lea.sflag [#allocation6], %s251
          %s253 = sand.u32 %s83, 1
          %s254 = smul.addr %s253, 512
          %s255 = scalar_lea.vmem [#allocation7], %s254
          %s256 = smul.u32 4, %s21
          %s258 = ssub.s32 8192, 8192
          %259 = vsyncadd %s252, %s258
          %s260 = smul.addr %s256, 16
          %s261 = smul.addr %s260, 128
          %s262 = scalar_lea.hbm %s2, %s261
          %s263 = sshll.u32 %s255, 4
          %s264 = int_to_ptr.vmem [resolvable:$true] %s263
          %269 = dma.hbm_to_vmem [thread:$0]  %s262, 8192, %s264, %s252, 128, 128, 8
        $region32: #{tpu_custom_call.1} parent=19 // pred_fallthru
          _
        // Predicated region
        $region33: #{tpu_custom_call.1} parent=19 // pred_check
          %p270 = pneg %p140
        $region34: #{tpu_custom_call.1} parent=19 // pred_check_branch
          %272 = sbr.rel (%p270) target = $region36
        $region35: #{tpu_custom_call.1} parent=19 // pred_region
          %s273 = sand.u32 %s21, 1
          %s274 = scalar_lea.sflag [#allocation3], %s273
          %s275 = sand.u32 %s130, 1
          %s276 = smul.addr %s275, 512
          %s277 = scalar_lea.vmem [#allocation10], %s276
          %s278 = smul.u32 4, %s21
          %s280 = ssub.s32 8192, 8192
          %281 = vsyncadd %s274, %s280
          %s282 = smul.addr %s278, 16
          %s283 = smul.addr %s282, 128
          %s284 = scalar_lea.hbm %s4, %s283
          %s285 = sshll.u32 %s277, 4
          %s286 = int_to_ptr.vmem [resolvable:$true] %s285
          %291 = dma.hbm_to_vmem [thread:$0]  %s284, 8192, %s286, %s274, 128, 128, 8
        $region36: #{tpu_custom_call.1} parent=19 // pred_fallthru
          _
      $region20: #{tpu_custom_call.1} parent=5 // pred_fallthru
        _
      %p292 = scmp.le.s32.totalorder 1, %s21
      %p293 = scmp.lt.s32.totalorder %s21, 3
      %p294 = pnand %p292, %p293
      %p295 = pneg %p294
      // Predicated region
      $region37: #{tpu_custom_call.1} parent=5 // pred_check
        _
      $region38: #{tpu_custom_call.1} parent=5 // pred_check_branch
        %297 = sbr.rel (%p294) target = $region40
      $region39: #{tpu_custom_call.1} parent=5 // pred_region
        %s298 = ssub.s32 %s21, 1
        %s299 = sand.u32 %s26, 1
        %s300 = scalar_lea.sflag [#allocation3], %s299
        %s301 = sand.u32 %s34, 1
        %s302 = smul.addr %s301, 512
        %s303 = scalar_lea.vmem [#allocation2], %s302
        // Predicated region
        $region41: #{tpu_custom_call.1} parent=39 // pred_check
          %p304 = pneg %p47
        $region42: #{tpu_custom_call.1} parent=39 // pred_check_branch
          %306 = sbr.rel (%p304) target = $region44
        $region43: #{tpu_custom_call.1} parent=39 // pred_region
          %307 = dma.done %s300, 8192
        $region44: #{tpu_custom_call.1} parent=39 // pred_fallthru
          _
        %s308 = sand.u32 %s26, 1
        %s309 = scalar_lea.sflag [#allocation6], %s308
        %s310 = sand.u32 %s60, 1
        %s311 = smul.addr %s310, 512
        %s312 = scalar_lea.vmem [#allocation5], %s311
        // Predicated region
        $region45: #{tpu_custom_call.1} parent=39 // pred_check
          %p313 = pneg %p73
        $region46: #{tpu_custom_call.1} parent=39 // pred_check_branch
          %315 = sbr.rel (%p313) target = $region48
        $region47: #{tpu_custom_call.1} parent=39 // pred_region
          %316 = dma.done %s309, 8192
        $region48: #{tpu_custom_call.1} parent=39 // pred_fallthru
          _
        %s317 = sand.u32 %s26, 1
        %s318 = scalar_lea.sflag [#allocation6], %s317
        %s319 = sand.u32 %s86, 1
        %s320 = smul.addr %s319, 512
        %s321 = scalar_lea.vmem [#allocation7], %s320
        // Predicated region
        $region49: #{tpu_custom_call.1} parent=39 // pred_check
          %p322 = pneg %p99
        $region50: #{tpu_custom_call.1} parent=39 // pred_check_branch
          %324 = sbr.rel (%p322) target = $region52
        $region51: #{tpu_custom_call.1} parent=39 // pred_region
          %325 = dma.done %s318, 8192
        $region52: #{tpu_custom_call.1} parent=39 // pred_fallthru
          _
        // Predicated region
        $region53: #{tpu_custom_call.1} parent=39 // pred_check
          %p326 = pneg %p120
        $region54: #{tpu_custom_call.1} parent=39 // pred_check_branch
          %328 = sbr.rel (%p326) target = $region56
        $region55: #{tpu_custom_call.1} parent=39 // pred_region
          %329 = dma.done [#allocation9], 2048
        $region56: #{tpu_custom_call.1} parent=39 // pred_fallthru
          _
        %s330 = sand.u32 %s26, 1
        %s331 = scalar_lea.sflag [#allocation3], %s330
        %s332 = sand.u32 %s133, 1
        %s333 = smul.addr %s332, 512
        %s334 = scalar_lea.vmem [#allocation10], %s333
        // Predicated region
        $region57: #{tpu_custom_call.1} parent=39 // pred_check
          %p335 = pneg %p146
        $region58: #{tpu_custom_call.1} parent=39 // pred_check_branch
          %337 = sbr.rel (%p335) target = $region60
        $region59: #{tpu_custom_call.1} parent=39 // pred_region
          %338 = dma.done %s331, 8192
        $region60: #{tpu_custom_call.1} parent=39 // pred_fallthru
          _
        %s339 = sand.u32 %s26, 1
        %s340 = scalar_lea.sflag [#allocation3], %s339
        %s341 = sand.u32 %s34, 1
        %s342 = smul.addr %s341, 512
        %s343 = scalar_lea.vmem [#allocation2], %s342
        %p344 = pneg %p47
        %p345 = pneg %p44
        %s346 = sand.u32 %s26, 1
        %s347 = scalar_lea.sflag [#allocation6], %s346
        %s348 = sand.u32 %s60, 1
        %s349 = smul.addr %s348, 512
        %s350 = scalar_lea.vmem [#allocation5], %s349
        %p351 = pneg %p73
        %p352 = pneg %p70
        %s353 = sand.u32 %s26, 1
        %s354 = scalar_lea.sflag [#allocation6], %s353
        %s355 = sand.u32 %s86, 1
        %s356 = smul.addr %s355, 512
        %s357 = scalar_lea.vmem [#allocation7], %s356
        %p358 = pneg %p99
        %p359 = pneg %p96
        %p360 = pneg %p120
        %p361 = pneg %p117
        %s362 = sand.u32 %s26, 1
        %s363 = scalar_lea.sflag [#allocation3], %s362
        %s364 = sand.u32 %s133, 1
        %s365 = smul.addr %s364, 512
        %s366 = scalar_lea.vmem [#allocation10], %s365
        %p367 = pneg %p146
        %p368 = pneg %p143
        %p369 = pneg %p172
        %p370 = pneg %p169
        %s371 = sand.u32 %s159, 1
        %s372 = scalar_lea.sflag [#allocation4], %s371
        %s373 = sand.u32 %s159, 1
        %s374 = smul.addr %s373, 512
        %s375 = scalar_lea.vmem [#allocation11], %s374
        %s376 = smul.u32 4, %s26
        %s377 = smul.u32 4, %s26
        %s378 = smul.u32 4, %s26
        %s379 = smul.u32 4, %s26
        %s380 = smul.u32 4, %s26
        %v381 = vld [vmem:[%s303] sm:$0xff]
        %v382 = vld [vmem:[%s303 + $0x8] sm:$0xff]
        %v383 = vld [vmem:[%s303 + $0x10] sm:$0xff]
        %v384 = vld [vmem:[%s303 + $0x18] sm:$0xff]
        %v385 = vld [vmem:[%s303 + $0x20] sm:$0xff]
        %v386 = vld [vmem:[%s303 + $0x28] sm:$0xff]
        %v387 = vld [vmem:[%s303 + $0x30] sm:$0xff]
        %v388 = vld [vmem:[%s303 + $0x38] sm:$0xff]
        %v389 = vld [vmem:[%s303 + $0x40] sm:$0xff]
        %v390 = vld [vmem:[%s303 + $0x48] sm:$0xff]
        %v391 = vld [vmem:[%s303 + $0x50] sm:$0xff]
        %v392 = vld [vmem:[%s303 + $0x58] sm:$0xff]
        %v393 = vld [vmem:[%s303 + $0x60] sm:$0xff]
        %v394 = vld [vmem:[%s303 + $0x68] sm:$0xff]
        %v395 = vld [vmem:[%s303 + $0x70] sm:$0xff]
        %v396 = vld [vmem:[%s303 + $0x78] sm:$0xff]
        %v397 = vld [vmem:[%s303 + $0x80] sm:$0xff]
        %v398 = vld [vmem:[%s303 + $0x88] sm:$0xff]
        %v399 = vld [vmem:[%s303 + $0x90] sm:$0xff]
        %v400 = vld [vmem:[%s303 + $0x98] sm:$0xff]
        %v401 = vld [vmem:[%s303 + $0xa0] sm:$0xff]
        %v402 = vld [vmem:[%s303 + $0xa8] sm:$0xff]
        %v403 = vld [vmem:[%s303 + $0xb0] sm:$0xff]
        %v404 = vld [vmem:[%s303 + $0xb8] sm:$0xff]
        %v405 = vld [vmem:[%s303 + $0xc0] sm:$0xff]
        %v406 = vld [vmem:[%s303 + $0xc8] sm:$0xff]
        %v407 = vld [vmem:[%s303 + $0xd0] sm:$0xff]
        %v408 = vld [vmem:[%s303 + $0xd8] sm:$0xff]
        %v409 = vld [vmem:[%s303 + $0xe0] sm:$0xff]
        %v410 = vld [vmem:[%s303 + $0xe8] sm:$0xff]
        %v411 = vld [vmem:[%s303 + $0xf0] sm:$0xff]
        %v412 = vld [vmem:[%s303 + $0xf8] sm:$0xff]
        %v413 = vld [vmem:[%s303 + $0x100] sm:$0xff]
        %v414 = vld [vmem:[%s303 + $0x108] sm:$0xff]
        %v415 = vld [vmem:[%s303 + $0x110] sm:$0xff]
        %v416 = vld [vmem:[%s303 + $0x118] sm:$0xff]
        %v417 = vld [vmem:[%s303 + $0x120] sm:$0xff]
        %v418 = vld [vmem:[%s303 + $0x128] sm:$0xff]
        %v419 = vld [vmem:[%s303 + $0x130] sm:$0xff]
        %v420 = vld [vmem:[%s303 + $0x138] sm:$0xff]
        %v421 = vld [vmem:[%s303 + $0x140] sm:$0xff]
        %v422 = vld [vmem:[%s303 + $0x148] sm:$0xff]
        %v423 = vld [vmem:[%s303 + $0x150] sm:$0xff]
        %v424 = vld [vmem:[%s303 + $0x158] sm:$0xff]
        %v425 = vld [vmem:[%s303 + $0x160] sm:$0xff]
        %v426 = vld [vmem:[%s303 + $0x168] sm:$0xff]
        %v427 = vld [vmem:[%s303 + $0x170] sm:$0xff]
        %v428 = vld [vmem:[%s303 + $0x178] sm:$0xff]
        %v429 = vld [vmem:[%s303 + $0x180] sm:$0xff]
        %v430 = vld [vmem:[%s303 + $0x188] sm:$0xff]
        %v431 = vld [vmem:[%s303 + $0x190] sm:$0xff]
        %v432 = vld [vmem:[%s303 + $0x198] sm:$0xff]
        %v433 = vld [vmem:[%s303 + $0x1a0] sm:$0xff]
        %v434 = vld [vmem:[%s303 + $0x1a8] sm:$0xff]
        %v435 = vld [vmem:[%s303 + $0x1b0] sm:$0xff]
        %v436 = vld [vmem:[%s303 + $0x1b8] sm:$0xff]
        %v437 = vld [vmem:[%s303 + $0x1c0] sm:$0xff]
        %v438 = vld [vmem:[%s303 + $0x1c8] sm:$0xff]
        %v439 = vld [vmem:[%s303 + $0x1d0] sm:$0xff]
        %v440 = vld [vmem:[%s303 + $0x1d8] sm:$0xff]
        %v441 = vld [vmem:[%s303 + $0x1e0] sm:$0xff]
        %v442 = vld [vmem:[%s303 + $0x1e8] sm:$0xff]
        %v443 = vld [vmem:[%s303 + $0x1f0] sm:$0xff]
        %v444 = vld [vmem:[%s303 + $0x1f8] sm:$0xff]
        %v445 = vld [vmem:[%s312] sm:$0xff]
        %v446 = vld [vmem:[%s312 + $0x8] sm:$0xff]
        %v447 = vld [vmem:[%s312 + $0x10] sm:$0xff]
        %v448 = vld [vmem:[%s312 + $0x18] sm:$0xff]
        %v449 = vld [vmem:[%s312 + $0x20] sm:$0xff]
        %v450 = vld [vmem:[%s312 + $0x28] sm:$0xff]
        %v451 = vld [vmem:[%s312 + $0x30] sm:$0xff]
        %v452 = vld [vmem:[%s312 + $0x38] sm:$0xff]
        %v453 = vld [vmem:[%s312 + $0x40] sm:$0xff]
        %v454 = vld [vmem:[%s312 + $0x48] sm:$0xff]
        %v455 = vld [vmem:[%s312 + $0x50] sm:$0xff]
        %v456 = vld [vmem:[%s312 + $0x58] sm:$0xff]
        %v457 = vld [vmem:[%s312 + $0x60] sm:$0xff]
        %v458 = vld [vmem:[%s312 + $0x68] sm:$0xff]
        %v459 = vld [vmem:[%s312 + $0x70] sm:$0xff]
        %v460 = vld [vmem:[%s312 + $0x78] sm:$0xff]
        %v461 = vld [vmem:[%s312 + $0x80] sm:$0xff]
        %v462 = vld [vmem:[%s312 + $0x88] sm:$0xff]
        %v463 = vld [vmem:[%s312 + $0x90] sm:$0xff]
        %v464 = vld [vmem:[%s312 + $0x98] sm:$0xff]
        %v465 = vld [vmem:[%s312 + $0xa0] sm:$0xff]
        %v466 = vld [vmem:[%s312 + $0xa8] sm:$0xff]
        %v467 = vld [vmem:[%s312 + $0xb0] sm:$0xff]
        %v468 = vld [vmem:[%s312 + $0xb8] sm:$0xff]
        %v469 = vld [vmem:[%s312 + $0xc0] sm:$0xff]
        %v470 = vld [vmem:[%s312 + $0xc8] sm:$0xff]
        %v471 = vld [vmem:[%s312 + $0xd0] sm:$0xff]
        %v472 = vld [vmem:[%s312 + $0xd8] sm:$0xff]
        %v473 = vld [vmem:[%s312 + $0xe0] sm:$0xff]
        %v474 = vld [vmem:[%s312 + $0xe8] sm:$0xff]
        %v475 = vld [vmem:[%s312 + $0xf0] sm:$0xff]
        %v476 = vld [vmem:[%s312 + $0xf8] sm:$0xff]
        %v477 = vld [vmem:[%s312 + $0x100] sm:$0xff]
        %v478 = vld [vmem:[%s312 + $0x108] sm:$0xff]
        %v479 = vld [vmem:[%s312 + $0x110] sm:$0xff]
        %v480 = vld [vmem:[%s312 + $0x118] sm:$0xff]
        %v481 = vld [vmem:[%s312 + $0x120] sm:$0xff]
        %v482 = vld [vmem:[%s312 + $0x128] sm:$0xff]
        %v483 = vld [vmem:[%s312 + $0x130] sm:$0xff]
        %v484 = vld [vmem:[%s312 + $0x138] sm:$0xff]
        %v485 = vld [vmem:[%s312 + $0x140] sm:$0xff]
        %v486 = vld [vmem:[%s312 + $0x148] sm:$0xff]
        %v487 = vld [vmem:[%s312 + $0x150] sm:$0xff]
        %v488 = vld [vmem:[%s312 + $0x158] sm:$0xff]
        %v489 = vld [vmem:[%s312 + $0x160] sm:$0xff]
        %v490 = vld [vmem:[%s312 + $0x168] sm:$0xff]
        %v491 = vld [vmem:[%s312 + $0x170] sm:$0xff]
        %v492 = vld [vmem:[%s312 + $0x178] sm:$0xff]
        %v493 = vld [vmem:[%s312 + $0x180] sm:$0xff]
        %v494 = vld [vmem:[%s312 + $0x188] sm:$0xff]
        %v495 = vld [vmem:[%s312 + $0x190] sm:$0xff]
        %v496 = vld [vmem:[%s312 + $0x198] sm:$0xff]
        %v497 = vld [vmem:[%s312 + $0x1a0] sm:$0xff]
        %v498 = vld [vmem:[%s312 + $0x1a8] sm:$0xff]
        %v499 = vld [vmem:[%s312 + $0x1b0] sm:$0xff]
        %v500 = vld [vmem:[%s312 + $0x1b8] sm:$0xff]
        %v501 = vld [vmem:[%s312 + $0x1c0] sm:$0xff]
        %v502 = vld [vmem:[%s312 + $0x1c8] sm:$0xff]
        %v503 = vld [vmem:[%s312 + $0x1d0] sm:$0xff]
        %v504 = vld [vmem:[%s312 + $0x1d8] sm:$0xff]
        %v505 = vld [vmem:[%s312 + $0x1e0] sm:$0xff]
        %v506 = vld [vmem:[%s312 + $0x1e8] sm:$0xff]
        %v507 = vld [vmem:[%s312 + $0x1f0] sm:$0xff]
        %v508 = vld [vmem:[%s312 + $0x1f8] sm:$0xff]
        %v509 = vld [vmem:[%s321] sm:$0xff]
        %v510 = vld [vmem:[%s321 + $0x8] sm:$0xff]
        %v511 = vld [vmem:[%s321 + $0x10] sm:$0xff]
        %v512 = vld [vmem:[%s321 + $0x18] sm:$0xff]
        %v513 = vld [vmem:[%s321 + $0x20] sm:$0xff]
        %v514 = vld [vmem:[%s321 + $0x28] sm:$0xff]
        %v515 = vld [vmem:[%s321 + $0x30] sm:$0xff]
        %v516 = vld [vmem:[%s321 + $0x38] sm:$0xff]
        %v517 = vld [vmem:[%s321 + $0x40] sm:$0xff]
        %v518 = vld [vmem:[%s321 + $0x48] sm:$0xff]
        %v519 = vld [vmem:[%s321 + $0x50] sm:$0xff]
        %v520 = vld [vmem:[%s321 + $0x58] sm:$0xff]
        %v521 = vld [vmem:[%s321 + $0x60] sm:$0xff]
        %v522 = vld [vmem:[%s321 + $0x68] sm:$0xff]
        %v523 = vld [vmem:[%s321 + $0x70] sm:$0xff]
        %v524 = vld [vmem:[%s321 + $0x78] sm:$0xff]
        %v525 = vld [vmem:[%s321 + $0x80] sm:$0xff]
        %v526 = vld [vmem:[%s321 + $0x88] sm:$0xff]
        %v527 = vld [vmem:[%s321 + $0x90] sm:$0xff]
        %v528 = vld [vmem:[%s321 + $0x98] sm:$0xff]
        %v529 = vld [vmem:[%s321 + $0xa0] sm:$0xff]
        %v530 = vld [vmem:[%s321 + $0xa8] sm:$0xff]
        %v531 = vld [vmem:[%s321 + $0xb0] sm:$0xff]
        %v532 = vld [vmem:[%s321 + $0xb8] sm:$0xff]
        %v533 = vld [vmem:[%s321 + $0xc0] sm:$0xff]
        %v534 = vld [vmem:[%s321 + $0xc8] sm:$0xff]
        %v535 = vld [vmem:[%s321 + $0xd0] sm:$0xff]
        %v536 = vld [vmem:[%s321 + $0xd8] sm:$0xff]
        %v537 = vld [vmem:[%s321 + $0xe0] sm:$0xff]
        %v538 = vld [vmem:[%s321 + $0xe8] sm:$0xff]
        %v539 = vld [vmem:[%s321 + $0xf0] sm:$0xff]
        %v540 = vld [vmem:[%s321 + $0xf8] sm:$0xff]
        %v541 = vld [vmem:[%s321 + $0x100] sm:$0xff]
        %v542 = vld [vmem:[%s321 + $0x108] sm:$0xff]
        %v543 = vld [vmem:[%s321 + $0x110] sm:$0xff]
        %v544 = vld [vmem:[%s321 + $0x118] sm:$0xff]
        %v545 = vld [vmem:[%s321 + $0x120] sm:$0xff]
        %v546 = vld [vmem:[%s321 + $0x128] sm:$0xff]
        %v547 = vld [vmem:[%s321 + $0x130] sm:$0xff]
        %v548 = vld [vmem:[%s321 + $0x138] sm:$0xff]
        %v549 = vld [vmem:[%s321 + $0x140] sm:$0xff]
        %v550 = vld [vmem:[%s321 + $0x148] sm:$0xff]
        %v551 = vld [vmem:[%s321 + $0x150] sm:$0xff]
        %v552 = vld [vmem:[%s321 + $0x158] sm:$0xff]
        %v553 = vld [vmem:[%s321 + $0x160] sm:$0xff]
        %v554 = vld [vmem:[%s321 + $0x168] sm:$0xff]
        %v555 = vld [vmem:[%s321 + $0x170] sm:$0xff]
        %v556 = vld [vmem:[%s321 + $0x178] sm:$0xff]
        %v557 = vld [vmem:[%s321 + $0x180] sm:$0xff]
        %v558 = vld [vmem:[%s321 + $0x188] sm:$0xff]
        %v559 = vld [vmem:[%s321 + $0x190] sm:$0xff]
        %v560 = vld [vmem:[%s321 + $0x198] sm:$0xff]
        %v561 = vld [vmem:[%s321 + $0x1a0] sm:$0xff]
        %v562 = vld [vmem:[%s321 + $0x1a8] sm:$0xff]
        %v563 = vld [vmem:[%s321 + $0x1b0] sm:$0xff]
        %v564 = vld [vmem:[%s321 + $0x1b8] sm:$0xff]
        %v565 = vld [vmem:[%s321 + $0x1c0] sm:$0xff]
        %v566 = vld [vmem:[%s321 + $0x1c8] sm:$0xff]
        %v567 = vld [vmem:[%s321 + $0x1d0] sm:$0xff]
        %v568 = vld [vmem:[%s321 + $0x1d8] sm:$0xff]
        %v569 = vld [vmem:[%s321 + $0x1e0] sm:$0xff]
        %v570 = vld [vmem:[%s321 + $0x1e8] sm:$0xff]
        %v571 = vld [vmem:[%s321 + $0x1f0] sm:$0xff]
        %v572 = vld [vmem:[%s321 + $0x1f8] sm:$0xff]
        %v573 = vld [vmem:[#allocation8] sm:$0xff]
        %v574 = vld [vmem:[#allocation8 + $0x8] sm:$0xff]
        %v575 = vld [vmem:[#allocation8 + $0x10] sm:$0xff]
        %v576 = vld [vmem:[#allocation8 + $0x18] sm:$0xff]
        %v577 = vld [vmem:[#allocation8 + $0x20] sm:$0xff]
        %v578 = vld [vmem:[#allocation8 + $0x28] sm:$0xff]
        %v579 = vld [vmem:[#allocation8 + $0x30] sm:$0xff]
        %v580 = vld [vmem:[#allocation8 + $0x38] sm:$0xff]
        %v581 = vld [vmem:[#allocation8 + $0x40] sm:$0xff]
        %v582 = vld [vmem:[#allocation8 + $0x48] sm:$0xff]
        %v583 = vld [vmem:[#allocation8 + $0x50] sm:$0xff]
        %v584 = vld [vmem:[#allocation8 + $0x58] sm:$0xff]
        %v585 = vld [vmem:[#allocation8 + $0x60] sm:$0xff]
        %v586 = vld [vmem:[#allocation8 + $0x68] sm:$0xff]
        %v587 = vld [vmem:[#allocation8 + $0x70] sm:$0xff]
        %v588 = vld [vmem:[#allocation8 + $0x78] sm:$0xff]
        %589 = vmatprep.subr.mxu0 0.0
        %590 = vmatpush1.xpose.msra.mxu0 %v445
        %591 = vmatprep.subr.mxu0 0.0
        %592 = vmatpush1.xpose.msra.mxu0 %v446
        %593 = vmatprep.subr.mxu0 0.0
        %594 = vmatpush1.xpose.msra.mxu0 %v447
        %595 = vmatprep.subr.mxu0 0.0
        %596 = vmatpush1.xpose.msra.mxu0 %v448
        %597 = vmatprep.subr.mxu0 0.0
        %598 = vmatpush1.xpose.msra.mxu0 %v449
        %599 = vmatprep.subr.mxu0 0.0
        %600 = vmatpush1.xpose.msra.mxu0 %v450
        %601 = vmatprep.subr.mxu0 0.0
        %602 = vmatpush1.xpose.msra.mxu0 %v451
        %603 = vmatprep.subr.mxu0 0.0
        %604 = vmatpush1.xpose.msra.mxu0 %v452
        %605 = vmatprep.subr.mxu0 0.0
        %606 = vmatpush1.xpose.msra.mxu0 %v453
        %607 = vmatprep.subr.mxu0 0.0
        %608 = vmatpush1.xpose.msra.mxu0 %v454
        %609 = vmatprep.subr.mxu0 0.0
        %610 = vmatpush1.xpose.msra.mxu0 %v455
        %611 = vmatprep.subr.mxu0 0.0
        %612 = vmatpush1.xpose.msra.mxu0 %v456
        %613 = vmatprep.subr.mxu0 0.0
        %614 = vmatpush1.xpose.msra.mxu0 %v457
        %615 = vmatprep.subr.mxu0 0.0
        %616 = vmatpush1.xpose.msra.mxu0 %v458
        %617 = vmatprep.subr.mxu0 0.0
        %618 = vmatpush1.xpose.msra.mxu0 %v459
        %619 = vmatprep.subr.mxu0 0.0
        %620 = vmatpush1.xpose.msra.mxu0 %v460
        %621 = vmatprep.subr.mxu0 0.0
        %622 = vmatpush1.xpose.msra.mxu0 0.0
        %623 = vmatprep.subr.mxu0 0.0
        %624 = vmatpush1.xpose.msra.mxu0 0.0
        %625 = vmatprep.subr.mxu0 0.0
        %626 = vmatpush1.xpose.msra.mxu0 0.0
        %627 = vmatprep.subr.mxu0 0.0
        %628 = vmatpush1.xpose.msra.mxu0 0.0
        %629 = vmatprep.subr.mxu0 0.0
        %630 = vmatpush1.xpose.msra.mxu0 0.0
        %631 = vmatprep.subr.mxu0 0.0
        %632 = vmatpush1.xpose.msra.mxu0 0.0
        %633 = vmatprep.subr.mxu0 0.0
        %634 = vmatpush1.xpose.msra.mxu0 0.0
        %635 = vmatprep.subr.mxu0 0.0
        %636 = vmatpush1.xpose.msra.mxu0 0.0
        %637 = vmatprep.subr.mxu0 0.0
        %638 = vmatpush1.xpose.msra.mxu0 0.0
        %639 = vmatprep.subr.mxu0 0.0
        %640 = vmatpush1.xpose.msra.mxu0 0.0
        %641 = vmatprep.subr.mxu0 0.0
        %642 = vmatpush1.xpose.msra.mxu0 0.0
        %643 = vmatprep.subr.mxu0 0.0
        %644 = vmatpush1.xpose.msra.mxu0 0.0
        %645 = vmatprep.subr.mxu0 0.0
        %646 = vmatpush1.xpose.msra.mxu0 0.0
        %647 = vmatprep.subr.mxu0 0.0
        %648 = vmatpush1.xpose.msra.mxu0 0.0
        %649 = vmatprep.subr.mxu0 0.0
        %650 = vmatpush1.xpose.msra.mxu0 0.0
        %651 = vmatprep.subr.mxu0 0.0
        %652 = vmatpush1.xpose.msra.mxu0 0.0
        %653 = vmatprep.mubr.f32.mxu0 0.0
        %654 = vmatmul.mubr.f32.gmra.mrb[0].mxu0 %v381
        %v655 = vpop.f32.mrb[0].mxu0
        %v656 = vadd.f32 0.0, %v655
        %v657 = vpop.f32.mrb[0].mxu0
        %658 = vmatprep.mubr.f32.mxu0 0.0
        %659 = vmatmul.mubr.f32.gmra.mrb[0].mxu0 %v382
        %v660 = vpop.f32.mrb[0].mxu0
        %v661 = vadd.f32 0.0, %v660
        %v662 = vpop.f32.mrb[0].mxu0
        %663 = vmatprep.mubr.f32.mxu0 0.0
        %664 = vmatmul.mubr.f32.gmra.mrb[0].mxu0 %v383
        %v665 = vpop.f32.mrb[0].mxu0
        %v666 = vadd.f32 0.0, %v665
        %v667 = vpop.f32.mrb[0].mxu0
        %668 = vmatprep.mubr.f32.mxu0 0.0
        %669 = vmatmul.mubr.f32.gmra.mrb[0].mxu0 %v384
        %v670 = vpop.f32.mrb[0].mxu0
        %v671 = vadd.f32 0.0, %v670
        %v672 = vpop.f32.mrb[0].mxu0
        %673 = vmatprep.mubr.f32.mxu0 0.0
        %674 = vmatmul.mubr.f32.gmra.mrb[0].mxu0 %v385
        %v675 = vpop.f32.mrb[0].mxu0
        %v676 = vadd.f32 0.0, %v675
        %v677 = vpop.f32.mrb[0].mxu0
        %678 = vmatprep.mubr.f32.mxu0 0.0
        %679 = vmatmul.mubr.f32.gmra.mrb[0].mxu0 %v386
        %v680 = vpop.f32.mrb[0].mxu0
        %v681 = vadd.f32 0.0, %v680
        %v682 = vpop.f32.mrb[0].mxu0
        %683 = vmatprep.mubr.f32.mxu0 0.0
        %684 = vmatmul.mubr.f32.gmra.mrb[0].mxu0 %v387
        %v685 = vpop.f32.mrb[0].mxu0
        %v686 = vadd.f32 0.0, %v685
        %v687 = vpop.f32.mrb[0].mxu0
        %688 = vmatprep.mubr.f32.mxu0 0.0
        %689 = vmatmul.mubr.f32.gmra.mrb[0].mxu0 %v388
        %v690 = vpop.f32.mrb[0].mxu0
        %v691 = vadd.f32 0.0, %v690
        %v692 = vpop.f32.mrb[0].mxu0
        %693 = vmatprep.mubr.f32.mxu0 0.0
        %694 = vmatmul.mubr.f32.gmra.mrb[0].mxu0 %v389
        %v695 = vpop.f32.mrb[0].mxu0
        %v696 = vadd.f32 0.0, %v695
        %v697 = vpop.f32.mrb[0].mxu0
        %698 = vmatprep.mubr.f32.mxu0 0.0
        %699 = vmatmul.mubr.f32.gmra.mrb[0].mxu0 %v390
        %v700 = vpop.f32.mrb[0].mxu0
        %v701 = vadd.f32 0.0, %v700
        %v702 = vpop.f32.mrb[0].mxu0
        %703 = vmatprep.mubr.f32.mxu0 0.0
        %704 = vmatmul.mubr.f32.gmra.mrb[0].mxu0 %v391
        %v705 = vpop.f32.mrb[0].mxu0
        %v706 = vadd.f32 0.0, %v705
        %v707 = vpop.f32.mrb[0].mxu0
        %708 = vmatprep.mubr.f32.mxu0 0.0
        %709 = vmatmul.mubr.f32.gmra.mrb[0].mxu0 %v392
        %v710 = vpop.f32.mrb[0].mxu0
        %v711 = vadd.f32 0.0, %v710
        %v712 = vpop.f32.mrb[0].mxu0
        %713 = vmatprep.mubr.f32.mxu0 0.0
        %714 = vmatmul.mubr.f32.gmra.mrb[0].mxu0 %v393
        %v715 = vpop.f32.mrb[0].mxu0
        %v716 = vadd.f32 0.0, %v715
        %v717 = vpop.f32.mrb[0].mxu0
        %718 = vmatprep.mubr.f32.mxu0 0.0
        %719 = vmatmul.mubr.f32.gmra.mrb[0].mxu0 %v394
        %v720 = vpop.f32.mrb[0].mxu0
        %v721 = vadd.f32 0.0, %v720
        %v722 = vpop.f32.mrb[0].mxu0
        %723 = vmatprep.mubr.f32.mxu0 0.0
        %724 = vmatmul.mubr.f32.gmra.mrb[0].mxu0 %v395
        %v725 = vpop.f32.mrb[0].mxu0
        %v726 = vadd.f32 0.0, %v725
        %v727 = vpop.f32.mrb[0].mxu0
        %728 = vmatprep.mubr.f32.mxu0 0.0
        %729 = vmatmul.mubr.f32.gmra.mrb[0].mxu0 %v396
        %v730 = vpop.f32.mrb[0].mxu0
        %v731 = vadd.f32 0.0, %v730
        %v732 = vpop.f32.mrb[0].mxu0
        %733 = vdwg.mxu0
        %734 = vmatprep.subr.mxu0 0.0
        %735 = vmatpush1.xpose.msra.mxu0 %v461
        %736 = vmatprep.subr.mxu0 0.0
        %737 = vmatpush1.xpose.msra.mxu0 %v462
        %738 = vmatprep.subr.mxu0 0.0
        %739 = vmatpush1.xpose.msra.mxu0 %v463
        %740 = vmatprep.subr.mxu0 0.0
        %741 = vmatpush1.xpose.msra.mxu0 %v464
        %742 = vmatprep.subr.mxu0 0.0
        %743 = vmatpush1.xpose.msra.mxu0 %v465
        %744 = vmatprep.subr.mxu0 0.0
        %745 = vmatpush1.xpose.msra.mxu0 %v466
        %746 = vmatprep.subr.mxu0 0.0
        %747 = vmatpush1.xpose.msra.mxu0 %v467
        %748 = vmatprep.subr.mxu0 0.0
        %749 = vmatpush1.xpose.msra.mxu0 %v468
        %750 = vmatprep.subr.mxu0 0.0
        %751 = vmatpush1.xpose.msra.mxu0 %v469
        %752 = vmatprep.subr.mxu0 0.0
        %753 = vmatpush1.xpose.msra.mxu0 %v470
        %754 = vmatprep.subr.mxu0 0.0
        %755 = vmatpush1.xpose.msra.mxu0 %v471
        %756 = vmatprep.subr.mxu0 0.0
        %757 = vmatpush1.xpose.msra.mxu0 %v472
        %758 = vmatprep.subr.mxu0 0.0
        %759 = vmatpush1.xpose.msra.mxu0 %v473
        %760 = vmatprep.subr.mxu0 0.0
        %761 = vmatpush1.xpose.msra.mxu0 %v474
        %762 = vmatprep.subr.mxu0 0.0
        %763 = vmatpush1.xpose.msra.mxu0 %v475
        %764 = vmatprep.subr.mxu0 0.0
        %765 = vmatpush1.xpose.msra.mxu0 %v476
        %766 = vmatprep.subr.mxu0 0.0
        %767 = vmatpush1.xpose.msra.mxu0 0.0
        %768 = vmatprep.subr.mxu0 0.0
        %769 = vmatpush1.xpose.msra.mxu0 0.0
        %770 = vmatprep.subr.mxu0 0.0
        %771 = vmatpush1.xpose.msra.mxu0 0.0
        %772 = vmatprep.subr.mxu0 0.0
        %773 = vmatpush1.xpose.msra.mxu0 0.0
        %774 = vmatprep.subr.mxu0 0.0
        %775 = vmatpush1.xpose.msra.mxu0 0.0
        %776 = vmatprep.subr.mxu0 0.0
        %777 = vmatpush1.xpose.msra.mxu0 0.0
        %778 = vmatprep.subr.mxu0 0.0
        %779 = vmatpush1.xpose.msra.mxu0 0.0
        %780 = vmatprep.subr.mxu0 0.0
        %781 = vmatpush1.xpose.msra.mxu0 0.0
        %782 = vmatprep.subr.mxu0 0.0
        %783 = vmatpush1.xpose.msra.mxu0 0.0
        %784 = vmatprep.subr.mxu0 0.0
        %785 = vmatpush1.xpose.msra.mxu0 0.0
        %786 = vmatprep.subr.mxu0 0.0
        %787 = vmatpush1.xpose.msra.mxu0 0.0
        %788 = vmatprep.subr.mxu0 0.0
        %789 = vmatpush1.xpose.msra.mxu0 0.0
        %790 = vmatprep.subr.mxu0 0.0
        %791 = vmatpush1.xpose.msra.mxu0 0.0
        %792 = vmatprep.subr.mxu0 0.0
        %793 = vmatpush1.xpose.msra.mxu0 0.0
        %794 = vmatprep.subr.mxu0 0.0
        %795 = vmatpush1.xpose.msra.mxu0 0.0
        %796 = vmatprep.subr.mxu0 0.0
        %797 = vmatpush1.xpose.msra.mxu0 0.0
        %798 = vmatprep.mubr.f32.mxu0 0.0
        %799 = vmatmul.mubr.f32.gmra.mrb[0].mxu0 %v397
        %v800 = vpop.f32.mrb[0].mxu0
        %v801 = vadd.f32 0.0, %v800
        %v802 = vpop.f32.mrb[0].mxu0
        %803 = vmatprep.mubr.f32.mxu0 0.0
        %804 = vmatmul.mubr.f32.gmra.mrb[0].mxu0 %v398
        %v805 = vpop.f32.mrb[0].mxu0
        %v806 = vadd.f32 0.0, %v805
        %v807 = vpop.f32.mrb[0].mxu0
        %808 = vmatprep.mubr.f32.mxu0 0.0
        %809 = vmatmul.mubr.f32.gmra.mrb[0].mxu0 %v399
        %v810 = vpop.f32.mrb[0].mxu0
        %v811 = vadd.f32 0.0, %v810
        %v812 = vpop.f32.mrb[0].mxu0
        %813 = vmatprep.mubr.f32.mxu0 0.0
        %814 = vmatmul.mubr.f32.gmra.mrb[0].mxu0 %v400
        %v815 = vpop.f32.mrb[0].mxu0
        %v816 = vadd.f32 0.0, %v815
        %v817 = vpop.f32.mrb[0].mxu0
        %818 = vmatprep.mubr.f32.mxu0 0.0
        %819 = vmatmul.mubr.f32.gmra.mrb[0].mxu0 %v401
        %v820 = vpop.f32.mrb[0].mxu0
        %v821 = vadd.f32 0.0, %v820
        %v822 = vpop.f32.mrb[0].mxu0
        %823 = vmatprep.mubr.f32.mxu0 0.0
        %824 = vmatmul.mubr.f32.gmra.mrb[0].mxu0 %v402
        %v825 = vpop.f32.mrb[0].mxu0
        %v826 = vadd.f32 0.0, %v825
        %v827 = vpop.f32.mrb[0].mxu0
        %828 = vmatprep.mubr.f32.mxu0 0.0
        %829 = vmatmul.mubr.f32.gmra.mrb[0].mxu0 %v403
        %v830 = vpop.f32.mrb[0].mxu0
        %v831 = vadd.f32 0.0, %v830
        %v832 = vpop.f32.mrb[0].mxu0
        %833 = vmatprep.mubr.f32.mxu0 0.0
        %834 = vmatmul.mubr.f32.gmra.mrb[0].mxu0 %v404
        %v835 = vpop.f32.mrb[0].mxu0
        %v836 = vadd.f32 0.0, %v835
        %v837 = vpop.f32.mrb[0].mxu0
        %838 = vmatprep.mubr.f32.mxu0 0.0
        %839 = vmatmul.mubr.f32.gmra.mrb[0].mxu0 %v405
        %v840 = vpop.f32.mrb[0].mxu0
        %v841 = vadd.f32 0.0, %v840
        %v842 = vpop.f32.mrb[0].mxu0
        %843 = vmatprep.mubr.f32.mxu0 0.0
        %844 = vmatmul.mubr.f32.gmra.mrb[0].mxu0 %v406
        %v845 = vpop.f32.mrb[0].mxu0
        %v846 = vadd.f32 0.0, %v845
        %v847 = vpop.f32.mrb[0].mxu0
        %848 = vmatprep.mubr.f32.mxu0 0.0
        %849 = vmatmul.mubr.f32.gmra.mrb[0].mxu0 %v407
        %v850 = vpop.f32.mrb[0].mxu0
        %v851 = vadd.f32 0.0, %v850
        %v852 = vpop.f32.mrb[0].mxu0
        %853 = vmatprep.mubr.f32.mxu0 0.0
        %854 = vmatmul.mubr.f32.gmra.mrb[0].mxu0 %v408
        %v855 = vpop.f32.mrb[0].mxu0
        %v856 = vadd.f32 0.0, %v855
        %v857 = vpop.f32.mrb[0].mxu0
        %858 = vmatprep.mubr.f32.mxu0 0.0
        %859 = vmatmul.mubr.f32.gmra.mrb[0].mxu0 %v409
        %v860 = vpop.f32.mrb[0].mxu0
        %v861 = vadd.f32 0.0, %v860
        %v862 = vpop.f32.mrb[0].mxu0
        %863 = vmatprep.mubr.f32.mxu0 0.0
        %864 = vmatmul.mubr.f32.gmra.mrb[0].mxu0 %v410
        %v865 = vpop.f32.mrb[0].mxu0
        %v866 = vadd.f32 0.0, %v865
        %v867 = vpop.f32.mrb[0].mxu0
        %868 = vmatprep.mubr.f32.mxu0 0.0
        %869 = vmatmul.mubr.f32.gmra.mrb[0].mxu0 %v411
        %v870 = vpop.f32.mrb[0].mxu0
        %v871 = vadd.f32 0.0, %v870
        %v872 = vpop.f32.mrb[0].mxu0
        %873 = vmatprep.mubr.f32.mxu0 0.0
        %874 = vmatmul.mubr.f32.gmra.mrb[0].mxu0 %v412
        %v875 = vpop.f32.mrb[0].mxu0
        %v876 = vadd.f32 0.0, %v875
        %v877 = vpop.f32.mrb[0].mxu0
        %878 = vdwg.mxu0
        %879 = vmatprep.subr.mxu0 0.0
        %880 = vmatpush1.xpose.msra.mxu0 %v477
        %881 = vmatprep.subr.mxu0 0.0
        %882 = vmatpush1.xpose.msra.mxu0 %v478
        %883 = vmatprep.subr.mxu0 0.0
        %884 = vmatpush1.xpose.msra.mxu0 %v479
        %885 = vmatprep.subr.mxu0 0.0
        %886 = vmatpush1.xpose.msra.mxu0 %v480
        %887 = vmatprep.subr.mxu0 0.0
        %888 = vmatpush1.xpose.msra.mxu0 %v481
        %889 = vmatprep.subr.mxu0 0.0
        %890 = vmatpush1.xpose.msra.mxu0 %v482
        %891 = vmatprep.subr.mxu0 0.0
        %892 = vmatpush1.xpose.msra.mxu0 %v483
        %893 = vmatprep.subr.mxu0 0.0
        %894 = vmatpush1.xpose.msra.mxu0 %v484
        %895 = vmatprep.subr.mxu0 0.0
        %896 = vmatpush1.xpose.msra.mxu0 %v485
        %897 = vmatprep.subr.mxu0 0.0
        %898 = vmatpush1.xpose.msra.mxu0 %v486
        %899 = vmatprep.subr.mxu0 0.0
        %900 = vmatpush1.xpose.msra.mxu0 %v487
        %901 = vmatprep.subr.mxu0 0.0
        %902 = vmatpush1.xpose.msra.mxu0 %v488
        %903 = vmatprep.subr.mxu0 0.0
        %904 = vmatpush1.xpose.msra.mxu0 %v489
        %905 = vmatprep.subr.mxu0 0.0
        %906 = vmatpush1.xpose.msra.mxu0 %v490
        %907 = vmatprep.subr.mxu0 0.0
        %908 = vmatpush1.xpose.msra.mxu0 %v491
        %909 = vmatprep.subr.mxu0 0.0
        %910 = vmatpush1.xpose.msra.mxu0 %v492
        %911 = vmatprep.subr.mxu0 0.0
        %912 = vmatpush1.xpose.msra.mxu0 0.0
        %913 = vmatprep.subr.mxu0 0.0
        %914 = vmatpush1.xpose.msra.mxu0 0.0
        %915 = vmatprep.subr.mxu0 0.0
        %916 = vmatpush1.xpose.msra.mxu0 0.0
        %917 = vmatprep.subr.mxu0 0.0
        %918 = vmatpush1.xpose.msra.mxu0 0.0
        %919 = vmatprep.subr.mxu0 0.0
        %920 = vmatpush1.xpose.msra.mxu0 0.0
        %921 = vmatprep.subr.mxu0 0.0
        %922 = vmatpush1.xpose.msra.mxu0 0.0
        %923 = vmatprep.subr.mxu0 0.0
        %924 = vmatpush1.xpose.msra.mxu0 0.0
        %925 = vmatprep.subr.mxu0 0.0
        %926 = vmatpush1.xpose.msra.mxu0 0.0
        %927 = vmatprep.subr.mxu0 0.0
        %928 = vmatpush1.xpose.msra.mxu0 0.0
        %929 = vmatprep.subr.mxu0 0.0
        %930 = vmatpush1.xpose.msra.mxu0 0.0
        %931 = vmatprep.subr.mxu0 0.0
        %932 = vmatpush1.xpose.msra.mxu0 0.0
        %933 = vmatprep.subr.mxu0 0.0
        %934 = vmatpush1.xpose.msra.mxu0 0.0
        %935 = vmatprep.subr.mxu0 0.0
        %936 = vmatpush1.xpose.msra.mxu0 0.0
        %937 = vmatprep.subr.mxu0 0.0
        %938 = vmatpush1.xpose.msra.mxu0 0.0
        %939 = vmatprep.subr.mxu0 0.0
        %940 = vmatpush1.xpose.msra.mxu0 0.0
        %941 = vmatprep.subr.mxu0 0.0
        %942 = vmatpush1.xpose.msra.mxu0 0.0
        %943 = vmatprep.mubr.f32.mxu0 0.0
        %944 = vmatmul.mubr.f32.gmra.mrb[0].mxu0 %v413
        %v945 = vpop.f32.mrb[0].mxu0
        %v946 = vadd.f32 0.0, %v945
        %v947 = vpop.f32.mrb[0].mxu0
        %948 = vmatprep.mubr.f32.mxu0 0.0
        %949 = vmatmul.mubr.f32.gmra.mrb[0].mxu0 %v414
        %v950 = vpop.f32.mrb[0].mxu0
        %v951 = vadd.f32 0.0, %v950
        %v952 = vpop.f32.mrb[0].mxu0
        %953 = vmatprep.mubr.f32.mxu0 0.0
        %954 = vmatmul.mubr.f32.gmra.mrb[0].mxu0 %v415
        %v955 = vpop.f32.mrb[0].mxu0
        %v956 = vadd.f32 0.0, %v955
        %v957 = vpop.f32.mrb[0].mxu0
        %958 = vmatprep.mubr.f32.mxu0 0.0
        %959 = vmatmul.mubr.f32.gmra.mrb[0].mxu0 %v416
        %v960 = vpop.f32.mrb[0].mxu0
        %v961 = vadd.f32 0.0, %v960
        %v962 = vpop.f32.mrb[0].mxu0
        %963 = vmatprep.mubr.f32.mxu0 0.0
        %964 = vmatmul.mubr.f32.gmra.mrb[0].mxu0 %v417
        %v965 = vpop.f32.mrb[0].mxu0
        %v966 = vadd.f32 0.0, %v965
        %v967 = vpop.f32.mrb[0].mxu0
        %968 = vmatprep.mubr.f32.mxu0 0.0
        %969 = vmatmul.mubr.f32.gmra.mrb[0].mxu0 %v418
        %v970 = vpop.f32.mrb[0].mxu0
        %v971 = vadd.f32 0.0, %v970
        %v972 = vpop.f32.mrb[0].mxu0
        %973 = vmatprep.mubr.f32.mxu0 0.0
        %974 = vmatmul.mubr.f32.gmra.mrb[0].mxu0 %v419
        %v975 = vpop.f32.mrb[0].mxu0
        %v976 = vadd.f32 0.0, %v975
        %v977 = vpop.f32.mrb[0].mxu0
        %978 = vmatprep.mubr.f32.mxu0 0.0
        %979 = vmatmul.mubr.f32.gmra.mrb[0].mxu0 %v420
        %v980 = vpop.f32.mrb[0].mxu0
        %v981 = vadd.f32 0.0, %v980
        %v982 = vpop.f32.mrb[0].mxu0
        %983 = vmatprep.mubr.f32.mxu0 0.0
        %984 = vmatmul.mubr.f32.gmra.mrb[0].mxu0 %v421
        %v985 = vpop.f32.mrb[0].mxu0
        %v986 = vadd.f32 0.0, %v985
        %v987 = vpop.f32.mrb[0].mxu0
        %988 = vmatprep.mubr.f32.mxu0 0.0
        %989 = vmatmul.mubr.f32.gmra.mrb[0].mxu0 %v422
        %v990 = vpop.f32.mrb[0].mxu0
        %v991 = vadd.f32 0.0, %v990
        %v992 = vpop.f32.mrb[0].mxu0
        %993 = vmatprep.mubr.f32.mxu0 0.0
        %994 = vmatmul.mubr.f32.gmra.mrb[0].mxu0 %v423
        %v995 = vpop.f32.mrb[0].mxu0
        %v996 = vadd.f32 0.0, %v995
        %v997 = vpop.f32.mrb[0].mxu0
        %998 = vmatprep.mubr.f32.mxu0 0.0
        %999 = vmatmul.mubr.f32.gmra.mrb[0].mxu0 %v424
        %v1000 = vpop.f32.mrb[0].mxu0
        %v1001 = vadd.f32 0.0, %v1000
        %v1002 = vpop.f32.mrb[0].mxu0
        %1003 = vmatprep.mubr.f32.mxu0 0.0
        %1004 = vmatmul.mubr.f32.gmra.mrb[0].mxu0 %v425
        %v1005 = vpop.f32.mrb[0].mxu0
        %v1006 = vadd.f32 0.0, %v1005
        %v1007 = vpop.f32.mrb[0].mxu0
        %1008 = vmatprep.mubr.f32.mxu0 0.0
        %1009 = vmatmul.mubr.f32.gmra.mrb[0].mxu0 %v426
        %v1010 = vpop.f32.mrb[0].mxu0
        %v1011 = vadd.f32 0.0, %v1010
        %v1012 = vpop.f32.mrb[0].mxu0
        %1013 = vmatprep.mubr.f32.mxu0 0.0
        %1014 = vmatmul.mubr.f32.gmra.mrb[0].mxu0 %v427
        %v1015 = vpop.f32.mrb[0].mxu0
        %v1016 = vadd.f32 0.0, %v1015
        %v1017 = vpop.f32.mrb[0].mxu0
        %1018 = vmatprep.mubr.f32.mxu0 0.0
        %1019 = vmatmul.mubr.f32.gmra.mrb[0].mxu0 %v428
        %v1020 = vpop.f32.mrb[0].mxu0
        %v1021 = vadd.f32 0.0, %v1020
        %v1022 = vpop.f32.mrb[0].mxu0
        %1023 = vdwg.mxu0
        %1024 = vmatprep.subr.mxu0 0.0
        %1025 = vmatpush1.xpose.msra.mxu0 %v493
        %1026 = vmatprep.subr.mxu0 0.0
        %1027 = vmatpush1.xpose.msra.mxu0 %v494
        %1028 = vmatprep.subr.mxu0 0.0
        %1029 = vmatpush1.xpose.msra.mxu0 %v495
        %1030 = vmatprep.subr.mxu0 0.0
        %1031 = vmatpush1.xpose.msra.mxu0 %v496
        %1032 = vmatprep.subr.mxu0 0.0
        %1033 = vmatpush1.xpose.msra.mxu0 %v497
        %1034 = vmatprep.subr.mxu0 0.0
        %1035 = vmatpush1.xpose.msra.mxu0 %v498
        %1036 = vmatprep.subr.mxu0 0.0
        %1037 = vmatpush1.xpose.msra.mxu0 %v499
        %1038 = vmatprep.subr.mxu0 0.0
        %1039 = vmatpush1.xpose.msra.mxu0 %v500
        %1040 = vmatprep.subr.mxu0 0.0
        %1041 = vmatpush1.xpose.msra.mxu0 %v501
        %1042 = vmatprep.subr.mxu0 0.0
        %1043 = vmatpush1.xpose.msra.mxu0 %v502
        %1044 = vmatprep.subr.mxu0 0.0
        %1045 = vmatpush1.xpose.msra.mxu0 %v503
        %1046 = vmatprep.subr.mxu0 0.0
        %1047 = vmatpush1.xpose.msra.mxu0 %v504
        %1048 = vmatprep.subr.mxu0 0.0
        %1049 = vmatpush1.xpose.msra.mxu0 %v505
        %1050 = vmatprep.subr.mxu0 0.0
        %1051 = vmatpush1.xpose.msra.mxu0 %v506
        %1052 = vmatprep.subr.mxu0 0.0
        %1053 = vmatpush1.xpose.msra.mxu0 %v507
        %1054 = vmatprep.subr.mxu0 0.0
        %1055 = vmatpush1.xpose.msra.mxu0 %v508
        %1056 = vmatprep.subr.mxu0 0.0
        %1057 = vmatpush1.xpose.msra.mxu0 0.0
        %1058 = vmatprep.subr.mxu0 0.0
        %1059 = vmatpush1.xpose.msra.mxu0 0.0
        %1060 = vmatprep.subr.mxu0 0.0
        %1061 = vmatpush1.xpose.msra.mxu0 0.0
        %1062 = vmatprep.subr.mxu0 0.0
        %1063 = vmatpush1.xpose.msra.mxu0 0.0
        %1064 = vmatprep.subr.mxu0 0.0
        %1065 = vmatpush1.xpose.msra.mxu0 0.0
        %1066 = vmatprep.subr.mxu0 0.0
        %1067 = vmatpush1.xpose.msra.mxu0 0.0
        %1068 = vmatprep.subr.mxu0 0.0
        %1069 = vmatpush1.xpose.msra.mxu0 0.0
        %1070 = vmatprep.subr.mxu0 0.0
        %1071 = vmatpush1.xpose.msra.mxu0 0.0
        %1072 = vmatprep.subr.mxu0 0.0
        %1073 = vmatpush1.xpose.msra.mxu0 0.0
        %1074 = vmatprep.subr.mxu0 0.0
        %1075 = vmatpush1.xpose.msra.mxu0 0.0
        %1076 = vmatprep.subr.mxu0 0.0
        %1077 = vmatpush1.xpose.msra.mxu0 0.0
        %1078 = vmatprep.subr.mxu0 0.0
        %1079 = vmatpush1.xpose.msra.mxu0 0.0
        %1080 = vmatprep.subr.mxu0 0.0
        %1081 = vmatpush1.xpose.msra.mxu0 0.0
        %1082 = vmatprep.subr.mxu0 0.0
        %1083 = vmatpush1.xpose.msra.mxu0 0.0
        %1084 = vmatprep.subr.mxu0 0.0
        %1085 = vmatpush1.xpose.msra.mxu0 0.0
        %1086 = vmatprep.subr.mxu0 0.0
        %1087 = vmatpush1.xpose.msra.mxu0 0.0
        %1088 = vmatprep.mubr.f32.mxu0 0.0
        %1089 = vmatmul.mubr.f32.gmra.mrb[0].mxu0 %v429
        %v1090 = vpop.f32.mrb[0].mxu0
        %v1091 = vadd.f32 0.0, %v1090
        %v1092 = vpop.f32.mrb[0].mxu0
        %1093 = vmatprep.mubr.f32.mxu0 0.0
        %1094 = vmatmul.mubr.f32.gmra.mrb[0].mxu0 %v430
        %v1095 = vpop.f32.mrb[0].mxu0
        %v1096 = vadd.f32 0.0, %v1095
        %v1097 = vpop.f32.mrb[0].mxu0
        %1098 = vmatprep.mubr.f32.mxu0 0.0
        %1099 = vmatmul.mubr.f32.gmra.mrb[0].mxu0 %v431
        %v1100 = vpop.f32.mrb[0].mxu0
        %v1101 = vadd.f32 0.0, %v1100
        %v1102 = vpop.f32.mrb[0].mxu0
        %1103 = vmatprep.mubr.f32.mxu0 0.0
        %1104 = vmatmul.mubr.f32.gmra.mrb[0].mxu0 %v432
        %v1105 = vpop.f32.mrb[0].mxu0
        %v1106 = vadd.f32 0.0, %v1105
        %v1107 = vpop.f32.mrb[0].mxu0
        %1108 = vmatprep.mubr.f32.mxu0 0.0
        %1109 = vmatmul.mubr.f32.gmra.mrb[0].mxu0 %v433
        %v1110 = vpop.f32.mrb[0].mxu0
        %v1111 = vadd.f32 0.0, %v1110
        %v1112 = vpop.f32.mrb[0].mxu0
        %1113 = vmatprep.mubr.f32.mxu0 0.0
        %1114 = vmatmul.mubr.f32.gmra.mrb[0].mxu0 %v434
        %v1115 = vpop.f32.mrb[0].mxu0
        %v1116 = vadd.f32 0.0, %v1115
        %v1117 = vpop.f32.mrb[0].mxu0
        %1118 = vmatprep.mubr.f32.mxu0 0.0
        %1119 = vmatmul.mubr.f32.gmra.mrb[0].mxu0 %v435
        %v1120 = vpop.f32.mrb[0].mxu0
        %v1121 = vadd.f32 0.0, %v1120
        %v1122 = vpop.f32.mrb[0].mxu0
        %1123 = vmatprep.mubr.f32.mxu0 0.0
        %1124 = vmatmul.mubr.f32.gmra.mrb[0].mxu0 %v436
        %v1125 = vpop.f32.mrb[0].mxu0
        %v1126 = vadd.f32 0.0, %v1125
        %v1127 = vpop.f32.mrb[0].mxu0
        %1128 = vmatprep.mubr.f32.mxu0 0.0
        %1129 = vmatmul.mubr.f32.gmra.mrb[0].mxu0 %v437
        %v1130 = vpop.f32.mrb[0].mxu0
        %v1131 = vadd.f32 0.0, %v1130
        %v1132 = vpop.f32.mrb[0].mxu0
        %1133 = vmatprep.mubr.f32.mxu0 0.0
        %1134 = vmatmul.mubr.f32.gmra.mrb[0].mxu0 %v438
        %v1135 = vpop.f32.mrb[0].mxu0
        %v1136 = vadd.f32 0.0, %v1135
        %v1137 = vpop.f32.mrb[0].mxu0
        %1138 = vmatprep.mubr.f32.mxu0 0.0
        %1139 = vmatmul.mubr.f32.gmra.mrb[0].mxu0 %v439
        %v1140 = vpop.f32.mrb[0].mxu0
        %v1141 = vadd.f32 0.0, %v1140
        %v1142 = vpop.f32.mrb[0].mxu0
        %1143 = vmatprep.mubr.f32.mxu0 0.0
        %1144 = vmatmul.mubr.f32.gmra.mrb[0].mxu0 %v440
        %v1145 = vpop.f32.mrb[0].mxu0
        %v1146 = vadd.f32 0.0, %v1145
        %v1147 = vpop.f32.mrb[0].mxu0
        %1148 = vmatprep.mubr.f32.mxu0 0.0
        %1149 = vmatmul.mubr.f32.gmra.mrb[0].mxu0 %v441
        %v1150 = vpop.f32.mrb[0].mxu0
        %v1151 = vadd.f32 0.0, %v1150
        %v1152 = vpop.f32.mrb[0].mxu0
        %1153 = vmatprep.mubr.f32.mxu0 0.0
        %1154 = vmatmul.mubr.f32.gmra.mrb[0].mxu0 %v442
        %v1155 = vpop.f32.mrb[0].mxu0
        %v1156 = vadd.f32 0.0, %v1155
        %v1157 = vpop.f32.mrb[0].mxu0
        %1158 = vmatprep.mubr.f32.mxu0 0.0
        %1159 = vmatmul.mubr.f32.gmra.mrb[0].mxu0 %v443
        %v1160 = vpop.f32.mrb[0].mxu0
        %v1161 = vadd.f32 0.0, %v1160
        %v1162 = vpop.f32.mrb[0].mxu0
        %1163 = vmatprep.mubr.f32.mxu0 0.0
        %1164 = vmatmul.mubr.f32.gmra.mrb[0].mxu0 %v444
        %v1165 = vpop.f32.mrb[0].mxu0
        %v1166 = vadd.f32 0.0, %v1165
        %v1167 = vpop.f32.mrb[0].mxu0
        %1168 = vdwg.mxu0
        %v1169 = vmul.f32 %v656, 0.2581989
        %v1170 = vmul.f32 %v661, 0.2581989
        %v1171 = vmul.f32 %v666, 0.2581989
        %v1172 = vmul.f32 %v671, 0.2581989
        %v1173 = vmul.f32 %v676, 0.2581989
        %v1174 = vmul.f32 %v681, 0.2581989
        %v1175 = vmul.f32 %v686, 0.2581989
        %v1176 = vmul.f32 %v691, 0.2581989
        %v1177 = vmul.f32 %v696, 0.2581989
        %v1178 = vmul.f32 %v701, 0.2581989
        %v1179 = vmul.f32 %v706, 0.2581989
        %v1180 = vmul.f32 %v711, 0.2581989
        %v1181 = vmul.f32 %v716, 0.2581989
        %v1182 = vmul.f32 %v721, 0.2581989
        %v1183 = vmul.f32 %v726, 0.2581989
        %v1184 = vmul.f32 %v731, 0.2581989
        %v1185 = vmul.f32 %v801, 0.2581989
        %v1186 = vmul.f32 %v806, 0.2581989
        %v1187 = vmul.f32 %v811, 0.2581989
        %v1188 = vmul.f32 %v816, 0.2581989
        %v1189 = vmul.f32 %v821, 0.2581989
        %v1190 = vmul.f32 %v826, 0.2581989
        %v1191 = vmul.f32 %v831, 0.2581989
        %v1192 = vmul.f32 %v836, 0.2581989
        %v1193 = vmul.f32 %v841, 0.2581989
        %v1194 = vmul.f32 %v846, 0.2581989
        %v1195 = vmul.f32 %v851, 0.2581989
        %v1196 = vmul.f32 %v856, 0.2581989
        %v1197 = vmul.f32 %v861, 0.2581989
        %v1198 = vmul.f32 %v866, 0.2581989
        %v1199 = vmul.f32 %v871, 0.2581989
        %v1200 = vmul.f32 %v876, 0.2581989
        %v1201 = vmul.f32 %v946, 0.2581989
        %v1202 = vmul.f32 %v951, 0.2581989
        %v1203 = vmul.f32 %v956, 0.2581989
        %v1204 = vmul.f32 %v961, 0.2581989
        %v1205 = vmul.f32 %v966, 0.2581989
        %v1206 = vmul.f32 %v971, 0.2581989
        %v1207 = vmul.f32 %v976, 0.2581989
        %v1208 = vmul.f32 %v981, 0.2581989
        %v1209 = vmul.f32 %v986, 0.2581989
        %v1210 = vmul.f32 %v991, 0.2581989
        %v1211 = vmul.f32 %v996, 0.2581989
        %v1212 = vmul.f32 %v1001, 0.2581989
        %v1213 = vmul.f32 %v1006, 0.2581989
        %v1214 = vmul.f32 %v1011, 0.2581989
        %v1215 = vmul.f32 %v1016, 0.2581989
        %v1216 = vmul.f32 %v1021, 0.2581989
        %v1217 = vmul.f32 %v1091, 0.2581989
        %v1218 = vmul.f32 %v1096, 0.2581989
        %v1219 = vmul.f32 %v1101, 0.2581989
        %v1220 = vmul.f32 %v1106, 0.2581989
        %v1221 = vmul.f32 %v1111, 0.2581989
        %v1222 = vmul.f32 %v1116, 0.2581989
        %v1223 = vmul.f32 %v1121, 0.2581989
        %v1224 = vmul.f32 %v1126, 0.2581989
        %v1225 = vmul.f32 %v1131, 0.2581989
        %v1226 = vmul.f32 %v1136, 0.2581989
        %v1227 = vmul.f32 %v1141, 0.2581989
        %v1228 = vmul.f32 %v1146, 0.2581989
        %v1229 = vmul.f32 %v1151, 0.2581989
        %v1230 = vmul.f32 %v1156, 0.2581989
        %v1231 = vmul.f32 %v1161, 0.2581989
        %v1232 = vmul.f32 %v1166, 0.2581989
        %v1233 = vadd.f32 %v1169, %v573
        %v1234 = vadd.f32 %v1170, %v574
        %v1235 = vadd.f32 %v1171, %v575
        %v1236 = vadd.f32 %v1172, %v576
        %v1237 = vadd.f32 %v1173, %v577
        %v1238 = vadd.f32 %v1174, %v578
        %v1239 = vadd.f32 %v1175, %v579
        %v1240 = vadd.f32 %v1176, %v580
        %v1241 = vadd.f32 %v1177, %v581
        %v1242 = vadd.f32 %v1178, %v582
        %v1243 = vadd.f32 %v1179, %v583
        %v1244 = vadd.f32 %v1180, %v584
        %v1245 = vadd.f32 %v1181, %v585
        %v1246 = vadd.f32 %v1182, %v586
        %v1247 = vadd.f32 %v1183, %v587
        %v1248 = vadd.f32 %v1184, %v588
        %v1249 = vadd.f32 %v1185, %v573
        %v1250 = vadd.f32 %v1186, %v574
        %v1251 = vadd.f32 %v1187, %v575
        %v1252 = vadd.f32 %v1188, %v576
        %v1253 = vadd.f32 %v1189, %v577
        %v1254 = vadd.f32 %v1190, %v578
        %v1255 = vadd.f32 %v1191, %v579
        %v1256 = vadd.f32 %v1192, %v580
        %v1257 = vadd.f32 %v1193, %v581
        %v1258 = vadd.f32 %v1194, %v582
        %v1259 = vadd.f32 %v1195, %v583
        %v1260 = vadd.f32 %v1196, %v584
        %v1261 = vadd.f32 %v1197, %v585
        %v1262 = vadd.f32 %v1198, %v586
        %v1263 = vadd.f32 %v1199, %v587
        %v1264 = vadd.f32 %v1200, %v588
        %v1265 = vadd.f32 %v1201, %v573
        %v1266 = vadd.f32 %v1202, %v574
        %v1267 = vadd.f32 %v1203, %v575
        %v1268 = vadd.f32 %v1204, %v576
        %v1269 = vadd.f32 %v1205, %v577
        %v1270 = vadd.f32 %v1206, %v578
        %v1271 = vadd.f32 %v1207, %v579
        %v1272 = vadd.f32 %v1208, %v580
        %v1273 = vadd.f32 %v1209, %v581
        %v1274 = vadd.f32 %v1210, %v582
        %v1275 = vadd.f32 %v1211, %v583
        %v1276 = vadd.f32 %v1212, %v584
        %v1277 = vadd.f32 %v1213, %v585
        %v1278 = vadd.f32 %v1214, %v586
        %v1279 = vadd.f32 %v1215, %v587
        %v1280 = vadd.f32 %v1216, %v588
        %v1281 = vadd.f32 %v1217, %v573
        %v1282 = vadd.f32 %v1218, %v574
        %v1283 = vadd.f32 %v1219, %v575
        %v1284 = vadd.f32 %v1220, %v576
        %v1285 = vadd.f32 %v1221, %v577
        %v1286 = vadd.f32 %v1222, %v578
        %v1287 = vadd.f32 %v1223, %v579
        %v1288 = vadd.f32 %v1224, %v580
        %v1289 = vadd.f32 %v1225, %v581
        %v1290 = vadd.f32 %v1226, %v582
        %v1291 = vadd.f32 %v1227, %v583
        %v1292 = vadd.f32 %v1228, %v584
        %v1293 = vadd.f32 %v1229, %v585
        %v1294 = vadd.f32 %v1230, %v586
        %v1295 = vadd.f32 %v1231, %v587
        %v1296 = vadd.f32 %v1232, %v588
        %1297 = vmax.xlane.f32.xlu0 %v1233
        %v1298 = vpop.xlane.xlu0 %1297
        %1299 = vmax.xlane.f32.xlu0 %v1234
        %v1300 = vpop.xlane.xlu0 %1299
        %1301 = vmax.xlane.f32.xlu0 %v1235
        %v1302 = vpop.xlane.xlu0 %1301
        %1303 = vmax.xlane.f32.xlu0 %v1236
        %v1304 = vpop.xlane.xlu0 %1303
        %1305 = vmax.xlane.f32.xlu0 %v1237
        %v1306 = vpop.xlane.xlu0 %1305
        %1307 = vmax.xlane.f32.xlu0 %v1238
        %v1308 = vpop.xlane.xlu0 %1307
        %1309 = vmax.xlane.f32.xlu0 %v1239
        %v1310 = vpop.xlane.xlu0 %1309
        %1311 = vmax.xlane.f32.xlu0 %v1240
        %v1312 = vpop.xlane.xlu0 %1311
        %1313 = vmax.xlane.f32.xlu0 %v1241
        %v1314 = vpop.xlane.xlu0 %1313
        %1315 = vmax.xlane.f32.xlu0 %v1242
        %v1316 = vpop.xlane.xlu0 %1315
        %1317 = vmax.xlane.f32.xlu0 %v1243
        %v1318 = vpop.xlane.xlu0 %1317
        %1319 = vmax.xlane.f32.xlu0 %v1244
        %v1320 = vpop.xlane.xlu0 %1319
        %1321 = vmax.xlane.f32.xlu0 %v1245
        %v1322 = vpop.xlane.xlu0 %1321
        %1323 = vmax.xlane.f32.xlu0 %v1246
        %v1324 = vpop.xlane.xlu0 %1323
        %1325 = vmax.xlane.f32.xlu0 %v1247
        %v1326 = vpop.xlane.xlu0 %1325
        %1327 = vmax.xlane.f32.xlu0 %v1248
        %v1328 = vpop.xlane.xlu0 %1327
        %1329 = vmax.xlane.f32.xlu0 %v1249
        %v1330 = vpop.xlane.xlu0 %1329
        %1331 = vmax.xlane.f32.xlu0 %v1250
        %v1332 = vpop.xlane.xlu0 %1331
        %1333 = vmax.xlane.f32.xlu0 %v1251
        %v1334 = vpop.xlane.xlu0 %1333
        %1335 = vmax.xlane.f32.xlu0 %v1252
        %v1336 = vpop.xlane.xlu0 %1335
        %1337 = vmax.xlane.f32.xlu0 %v1253
        %v1338 = vpop.xlane.xlu0 %1337
        %1339 = vmax.xlane.f32.xlu0 %v1254
        %v1340 = vpop.xlane.xlu0 %1339
        %1341 = vmax.xlane.f32.xlu0 %v1255
        %v1342 = vpop.xlane.xlu0 %1341
        %1343 = vmax.xlane.f32.xlu0 %v1256
        %v1344 = vpop.xlane.xlu0 %1343
        %1345 = vmax.xlane.f32.xlu0 %v1257
        %v1346 = vpop.xlane.xlu0 %1345
        %1347 = vmax.xlane.f32.xlu0 %v1258
        %v1348 = vpop.xlane.xlu0 %1347
        %1349 = vmax.xlane.f32.xlu0 %v1259
        %v1350 = vpop.xlane.xlu0 %1349
        %1351 = vmax.xlane.f32.xlu0 %v1260
        %v1352 = vpop.xlane.xlu0 %1351
        %1353 = vmax.xlane.f32.xlu0 %v1261
        %v1354 = vpop.xlane.xlu0 %1353
        %1355 = vmax.xlane.f32.xlu0 %v1262
        %v1356 = vpop.xlane.xlu0 %1355
        %1357 = vmax.xlane.f32.xlu0 %v1263
        %v1358 = vpop.xlane.xlu0 %1357
        %1359 = vmax.xlane.f32.xlu0 %v1264
        %v1360 = vpop.xlane.xlu0 %1359
        %1361 = vmax.xlane.f32.xlu0 %v1265
        %v1362 = vpop.xlane.xlu0 %1361
        %1363 = vmax.xlane.f32.xlu0 %v1266
        %v1364 = vpop.xlane.xlu0 %1363
        %1365 = vmax.xlane.f32.xlu0 %v1267
        %v1366 = vpop.xlane.xlu0 %1365
        %1367 = vmax.xlane.f32.xlu0 %v1268
        %v1368 = vpop.xlane.xlu0 %1367
        %1369 = vmax.xlane.f32.xlu0 %v1269
        %v1370 = vpop.xlane.xlu0 %1369
        %1371 = vmax.xlane.f32.xlu0 %v1270
        %v1372 = vpop.xlane.xlu0 %1371
        %1373 = vmax.xlane.f32.xlu0 %v1271
        %v1374 = vpop.xlane.xlu0 %1373
        %1375 = vmax.xlane.f32.xlu0 %v1272
        %v1376 = vpop.xlane.xlu0 %1375
        %1377 = vmax.xlane.f32.xlu0 %v1273
        %v1378 = vpop.xlane.xlu0 %1377
        %1379 = vmax.xlane.f32.xlu0 %v1274
        %v1380 = vpop.xlane.xlu0 %1379
        %1381 = vmax.xlane.f32.xlu0 %v1275
        %v1382 = vpop.xlane.xlu0 %1381
        %1383 = vmax.xlane.f32.xlu0 %v1276
        %v1384 = vpop.xlane.xlu0 %1383
        %1385 = vmax.xlane.f32.xlu0 %v1277
        %v1386 = vpop.xlane.xlu0 %1385
        %1387 = vmax.xlane.f32.xlu0 %v1278
        %v1388 = vpop.xlane.xlu0 %1387
        %1389 = vmax.xlane.f32.xlu0 %v1279
        %v1390 = vpop.xlane.xlu0 %1389
        %1391 = vmax.xlane.f32.xlu0 %v1280
        %v1392 = vpop.xlane.xlu0 %1391
        %1393 = vmax.xlane.f32.xlu0 %v1281
        %v1394 = vpop.xlane.xlu0 %1393
        %1395 = vmax.xlane.f32.xlu0 %v1282
        %v1396 = vpop.xlane.xlu0 %1395
        %1397 = vmax.xlane.f32.xlu0 %v1283
        %v1398 = vpop.xlane.xlu0 %1397
        %1399 = vmax.xlane.f32.xlu0 %v1284
        %v1400 = vpop.xlane.xlu0 %1399
        %1401 = vmax.xlane.f32.xlu0 %v1285
        %v1402 = vpop.xlane.xlu0 %1401
        %1403 = vmax.xlane.f32.xlu0 %v1286
        %v1404 = vpop.xlane.xlu0 %1403
        %1405 = vmax.xlane.f32.xlu0 %v1287
        %v1406 = vpop.xlane.xlu0 %1405
        %1407 = vmax.xlane.f32.xlu0 %v1288
        %v1408 = vpop.xlane.xlu0 %1407
        %1409 = vmax.xlane.f32.xlu0 %v1289
        %v1410 = vpop.xlane.xlu0 %1409
        %1411 = vmax.xlane.f32.xlu0 %v1290
        %v1412 = vpop.xlane.xlu0 %1411
        %1413 = vmax.xlane.f32.xlu0 %v1291
        %v1414 = vpop.xlane.xlu0 %1413
        %1415 = vmax.xlane.f32.xlu0 %v1292
        %v1416 = vpop.xlane.xlu0 %1415
        %1417 = vmax.xlane.f32.xlu0 %v1293
        %v1418 = vpop.xlane.xlu0 %1417
        %1419 = vmax.xlane.f32.xlu0 %v1294
        %v1420 = vpop.xlane.xlu0 %1419
        %1421 = vmax.xlane.f32.xlu0 %v1295
        %v1422 = vpop.xlane.xlu0 %1421
        %1423 = vmax.xlane.f32.xlu0 %v1296
        %v1424 = vpop.xlane.xlu0 %1423
        %v1425 = vsub.f32 %v1233, %v1298
        %v1426 = vsub.f32 %v1234, %v1300
        %v1427 = vsub.f32 %v1235, %v1302
        %v1428 = vsub.f32 %v1236, %v1304
        %v1429 = vsub.f32 %v1237, %v1306
        %v1430 = vsub.f32 %v1238, %v1308
        %v1431 = vsub.f32 %v1239, %v1310
        %v1432 = vsub.f32 %v1240, %v1312
        %v1433 = vsub.f32 %v1241, %v1314
        %v1434 = vsub.f32 %v1242, %v1316
        %v1435 = vsub.f32 %v1243, %v1318
        %v1436 = vsub.f32 %v1244, %v1320
        %v1437 = vsub.f32 %v1245, %v1322
        %v1438 = vsub.f32 %v1246, %v1324
        %v1439 = vsub.f32 %v1247, %v1326
        %v1440 = vsub.f32 %v1248, %v1328
        %v1441 = vsub.f32 %v1249, %v1330
        %v1442 = vsub.f32 %v1250, %v1332
        %v1443 = vsub.f32 %v1251, %v1334
        %v1444 = vsub.f32 %v1252, %v1336
        %v1445 = vsub.f32 %v1253, %v1338
        %v1446 = vsub.f32 %v1254, %v1340
        %v1447 = vsub.f32 %v1255, %v1342
        %v1448 = vsub.f32 %v1256, %v1344
        %v1449 = vsub.f32 %v1257, %v1346
        %v1450 = vsub.f32 %v1258, %v1348
        %v1451 = vsub.f32 %v1259, %v1350
        %v1452 = vsub.f32 %v1260, %v1352
        %v1453 = vsub.f32 %v1261, %v1354
        %v1454 = vsub.f32 %v1262, %v1356
        %v1455 = vsub.f32 %v1263, %v1358
        %v1456 = vsub.f32 %v1264, %v1360
        %v1457 = vsub.f32 %v1265, %v1362
        %v1458 = vsub.f32 %v1266, %v1364
        %v1459 = vsub.f32 %v1267, %v1366
        %v1460 = vsub.f32 %v1268, %v1368
        %v1461 = vsub.f32 %v1269, %v1370
        %v1462 = vsub.f32 %v1270, %v1372
        %v1463 = vsub.f32 %v1271, %v1374
        %v1464 = vsub.f32 %v1272, %v1376
        %v1465 = vsub.f32 %v1273, %v1378
        %v1466 = vsub.f32 %v1274, %v1380
        %v1467 = vsub.f32 %v1275, %v1382
        %v1468 = vsub.f32 %v1276, %v1384
        %v1469 = vsub.f32 %v1277, %v1386
        %v1470 = vsub.f32 %v1278, %v1388
        %v1471 = vsub.f32 %v1279, %v1390
        %v1472 = vsub.f32 %v1280, %v1392
        %v1473 = vsub.f32 %v1281, %v1394
        %v1474 = vsub.f32 %v1282, %v1396
        %v1475 = vsub.f32 %v1283, %v1398
        %v1476 = vsub.f32 %v1284, %v1400
        %v1477 = vsub.f32 %v1285, %v1402
        %v1478 = vsub.f32 %v1286, %v1404
        %v1479 = vsub.f32 %v1287, %v1406
        %v1480 = vsub.f32 %v1288, %v1408
        %v1481 = vsub.f32 %v1289, %v1410
        %v1482 = vsub.f32 %v1290, %v1412
        %v1483 = vsub.f32 %v1291, %v1414
        %v1484 = vsub.f32 %v1292, %v1416
        %v1485 = vsub.f32 %v1293, %v1418
        %v1486 = vsub.f32 %v1294, %v1420
        %v1487 = vsub.f32 %v1295, %v1422
        %v1488 = vsub.f32 %v1296, %v1424
        %v1489 = vmul.f32 %v1425, 1.442695
        %v1490 = vpow.pop %v1489
        %v1491 = vmul.f32 %v1426, 1.442695
        %v1492 = vpow.pop %v1491
        %v1493 = vmul.f32 %v1427, 1.442695
        %v1494 = vpow.pop %v1493
        %v1495 = vmul.f32 %v1428, 1.442695
        %v1496 = vpow.pop %v1495
        %v1497 = vmul.f32 %v1429, 1.442695
        %v1498 = vpow.pop %v1497
        %v1499 = vmul.f32 %v1430, 1.442695
        %v1500 = vpow.pop %v1499
        %v1501 = vmul.f32 %v1431, 1.442695
        %v1502 = vpow.pop %v1501
        %v1503 = vmul.f32 %v1432, 1.442695
        %v1504 = vpow.pop %v1503
        %v1505 = vmul.f32 %v1433, 1.442695
        %v1506 = vpow.pop %v1505
        %v1507 = vmul.f32 %v1434, 1.442695
        %v1508 = vpow.pop %v1507
        %v1509 = vmul.f32 %v1435, 1.442695
        %v1510 = vpow.pop %v1509
        %v1511 = vmul.f32 %v1436, 1.442695
        %v1512 = vpow.pop %v1511
        %v1513 = vmul.f32 %v1437, 1.442695
        %v1514 = vpow.pop %v1513
        %v1515 = vmul.f32 %v1438, 1.442695
        %v1516 = vpow.pop %v1515
        %v1517 = vmul.f32 %v1439, 1.442695
        %v1518 = vpow.pop %v1517
        %v1519 = vmul.f32 %v1440, 1.442695
        %v1520 = vpow.pop %v1519
        %v1521 = vmul.f32 %v1441, 1.442695
        %v1522 = vpow.pop %v1521
        %v1523 = vmul.f32 %v1442, 1.442695
        %v1524 = vpow.pop %v1523
        %v1525 = vmul.f32 %v1443, 1.442695
        %v1526 = vpow.pop %v1525
        %v1527 = vmul.f32 %v1444, 1.442695
        %v1528 = vpow.pop %v1527
        %v1529 = vmul.f32 %v1445, 1.442695
        %v1530 = vpow.pop %v1529
        %v1531 = vmul.f32 %v1446, 1.442695
        %v1532 = vpow.pop %v1531
        %v1533 = vmul.f32 %v1447, 1.442695
        %v1534 = vpow.pop %v1533
        %v1535 = vmul.f32 %v1448, 1.442695
        %v1536 = vpow.pop %v1535
        %v1537 = vmul.f32 %v1449, 1.442695
        %v1538 = vpow.pop %v1537
        %v1539 = vmul.f32 %v1450, 1.442695
        %v1540 = vpow.pop %v1539
        %v1541 = vmul.f32 %v1451, 1.442695
        %v1542 = vpow.pop %v1541
        %v1543 = vmul.f32 %v1452, 1.442695
        %v1544 = vpow.pop %v1543
        %v1545 = vmul.f32 %v1453, 1.442695
        %v1546 = vpow.pop %v1545
        %v1547 = vmul.f32 %v1454, 1.442695
        %v1548 = vpow.pop %v1547
        %v1549 = vmul.f32 %v1455, 1.442695
        %v1550 = vpow.pop %v1549
        %v1551 = vmul.f32 %v1456, 1.442695
        %v1552 = vpow.pop %v1551
        %v1553 = vmul.f32 %v1457, 1.442695
        %v1554 = vpow.pop %v1553
        %v1555 = vmul.f32 %v1458, 1.442695
        %v1556 = vpow.pop %v1555
        %v1557 = vmul.f32 %v1459, 1.442695
        %v1558 = vpow.pop %v1557
        %v1559 = vmul.f32 %v1460, 1.442695
        %v1560 = vpow.pop %v1559
        %v1561 = vmul.f32 %v1461, 1.442695
        %v1562 = vpow.pop %v1561
        %v1563 = vmul.f32 %v1462, 1.442695
        %v1564 = vpow.pop %v1563
        %v1565 = vmul.f32 %v1463, 1.442695
        %v1566 = vpow.pop %v1565
        %v1567 = vmul.f32 %v1464, 1.442695
        %v1568 = vpow.pop %v1567
        %v1569 = vmul.f32 %v1465, 1.442695
        %v1570 = vpow.pop %v1569
        %v1571 = vmul.f32 %v1466, 1.442695
        %v1572 = vpow.pop %v1571
        %v1573 = vmul.f32 %v1467, 1.442695
        %v1574 = vpow.pop %v1573
        %v1575 = vmul.f32 %v1468, 1.442695
        %v1576 = vpow.pop %v1575
        %v1577 = vmul.f32 %v1469, 1.442695
        %v1578 = vpow.pop %v1577
        %v1579 = vmul.f32 %v1470, 1.442695
        %v1580 = vpow.pop %v1579
        %v1581 = vmul.f32 %v1471, 1.442695
        %v1582 = vpow.pop %v1581
        %v1583 = vmul.f32 %v1472, 1.442695
        %v1584 = vpow.pop %v1583
        %v1585 = vmul.f32 %v1473, 1.442695
        %v1586 = vpow.pop %v1585
        %v1587 = vmul.f32 %v1474, 1.442695
        %v1588 = vpow.pop %v1587
        %v1589 = vmul.f32 %v1475, 1.442695
        %v1590 = vpow.pop %v1589
        %v1591 = vmul.f32 %v1476, 1.442695
        %v1592 = vpow.pop %v1591
        %v1593 = vmul.f32 %v1477, 1.442695
        %v1594 = vpow.pop %v1593
        %v1595 = vmul.f32 %v1478, 1.442695
        %v1596 = vpow.pop %v1595
        %v1597 = vmul.f32 %v1479, 1.442695
        %v1598 = vpow.pop %v1597
        %v1599 = vmul.f32 %v1480, 1.442695
        %v1600 = vpow.pop %v1599
        %v1601 = vmul.f32 %v1481, 1.442695
        %v1602 = vpow.pop %v1601
        %v1603 = vmul.f32 %v1482, 1.442695
        %v1604 = vpow.pop %v1603
        %v1605 = vmul.f32 %v1483, 1.442695
        %v1606 = vpow.pop %v1605
        %v1607 = vmul.f32 %v1484, 1.442695
        %v1608 = vpow.pop %v1607
        %v1609 = vmul.f32 %v1485, 1.442695
        %v1610 = vpow.pop %v1609
        %v1611 = vmul.f32 %v1486, 1.442695
        %v1612 = vpow.pop %v1611
        %v1613 = vmul.f32 %v1487, 1.442695
        %v1614 = vpow.pop %v1613
        %v1615 = vmul.f32 %v1488, 1.442695
        %v1616 = vpow.pop %v1615
        %1617 = vadd.xlane.f32.xlu0 %v1490
        %v1618 = vpop.xlane.xlu0 %1617
        %1619 = vadd.xlane.f32.xlu0 %v1492
        %v1620 = vpop.xlane.xlu0 %1619
        %1621 = vadd.xlane.f32.xlu0 %v1494
        %v1622 = vpop.xlane.xlu0 %1621
        %1623 = vadd.xlane.f32.xlu0 %v1496
        %v1624 = vpop.xlane.xlu0 %1623
        %1625 = vadd.xlane.f32.xlu0 %v1498
        %v1626 = vpop.xlane.xlu0 %1625
        %1627 = vadd.xlane.f32.xlu0 %v1500
        %v1628 = vpop.xlane.xlu0 %1627
        %1629 = vadd.xlane.f32.xlu0 %v1502
        %v1630 = vpop.xlane.xlu0 %1629
        %1631 = vadd.xlane.f32.xlu0 %v1504
        %v1632 = vpop.xlane.xlu0 %1631
        %1633 = vadd.xlane.f32.xlu0 %v1506
        %v1634 = vpop.xlane.xlu0 %1633
        %1635 = vadd.xlane.f32.xlu0 %v1508
        %v1636 = vpop.xlane.xlu0 %1635
        %1637 = vadd.xlane.f32.xlu0 %v1510
        %v1638 = vpop.xlane.xlu0 %1637
        %1639 = vadd.xlane.f32.xlu0 %v1512
        %v1640 = vpop.xlane.xlu0 %1639
        %1641 = vadd.xlane.f32.xlu0 %v1514
        %v1642 = vpop.xlane.xlu0 %1641
        %1643 = vadd.xlane.f32.xlu0 %v1516
        %v1644 = vpop.xlane.xlu0 %1643
        %1645 = vadd.xlane.f32.xlu0 %v1518
        %v1646 = vpop.xlane.xlu0 %1645
        %1647 = vadd.xlane.f32.xlu0 %v1520
        %v1648 = vpop.xlane.xlu0 %1647
        %1649 = vadd.xlane.f32.xlu0 %v1522
        %v1650 = vpop.xlane.xlu0 %1649
        %1651 = vadd.xlane.f32.xlu0 %v1524
        %v1652 = vpop.xlane.xlu0 %1651
        %1653 = vadd.xlane.f32.xlu0 %v1526
        %v1654 = vpop.xlane.xlu0 %1653
        %1655 = vadd.xlane.f32.xlu0 %v1528
        %v1656 = vpop.xlane.xlu0 %1655
        %1657 = vadd.xlane.f32.xlu0 %v1530
        %v1658 = vpop.xlane.xlu0 %1657
        %1659 = vadd.xlane.f32.xlu0 %v1532
        %v1660 = vpop.xlane.xlu0 %1659
        %1661 = vadd.xlane.f32.xlu0 %v1534
        %v1662 = vpop.xlane.xlu0 %1661
        %1663 = vadd.xlane.f32.xlu0 %v1536
        %v1664 = vpop.xlane.xlu0 %1663
        %1665 = vadd.xlane.f32.xlu0 %v1538
        %v1666 = vpop.xlane.xlu0 %1665
        %1667 = vadd.xlane.f32.xlu0 %v1540
        %v1668 = vpop.xlane.xlu0 %1667
        %1669 = vadd.xlane.f32.xlu0 %v1542
        %v1670 = vpop.xlane.xlu0 %1669
        %1671 = vadd.xlane.f32.xlu0 %v1544
        %v1672 = vpop.xlane.xlu0 %1671
        %1673 = vadd.xlane.f32.xlu0 %v1546
        %v1674 = vpop.xlane.xlu0 %1673
        %1675 = vadd.xlane.f32.xlu0 %v1548
        %v1676 = vpop.xlane.xlu0 %1675
        %1677 = vadd.xlane.f32.xlu0 %v1550
        %v1678 = vpop.xlane.xlu0 %1677
        %1679 = vadd.xlane.f32.xlu0 %v1552
        %v1680 = vpop.xlane.xlu0 %1679
        %1681 = vadd.xlane.f32.xlu0 %v1554
        %v1682 = vpop.xlane.xlu0 %1681
        %1683 = vadd.xlane.f32.xlu0 %v1556
        %v1684 = vpop.xlane.xlu0 %1683
        %1685 = vadd.xlane.f32.xlu0 %v1558
        %v1686 = vpop.xlane.xlu0 %1685
        %1687 = vadd.xlane.f32.xlu0 %v1560
        %v1688 = vpop.xlane.xlu0 %1687
        %1689 = vadd.xlane.f32.xlu0 %v1562
        %v1690 = vpop.xlane.xlu0 %1689
        %1691 = vadd.xlane.f32.xlu0 %v1564
        %v1692 = vpop.xlane.xlu0 %1691
        %1693 = vadd.xlane.f32.xlu0 %v1566
        %v1694 = vpop.xlane.xlu0 %1693
        %1695 = vadd.xlane.f32.xlu0 %v1568
        %v1696 = vpop.xlane.xlu0 %1695
        %1697 = vadd.xlane.f32.xlu0 %v1570
        %v1698 = vpop.xlane.xlu0 %1697
        %1699 = vadd.xlane.f32.xlu0 %v1572
        %v1700 = vpop.xlane.xlu0 %1699
        %1701 = vadd.xlane.f32.xlu0 %v1574
        %v1702 = vpop.xlane.xlu0 %1701
        %1703 = vadd.xlane.f32.xlu0 %v1576
        %v1704 = vpop.xlane.xlu0 %1703
        %1705 = vadd.xlane.f32.xlu0 %v1578
        %v1706 = vpop.xlane.xlu0 %1705
        %1707 = vadd.xlane.f32.xlu0 %v1580
        %v1708 = vpop.xlane.xlu0 %1707
        %1709 = vadd.xlane.f32.xlu0 %v1582
        %v1710 = vpop.xlane.xlu0 %1709
        %1711 = vadd.xlane.f32.xlu0 %v1584
        %v1712 = vpop.xlane.xlu0 %1711
        %1713 = vadd.xlane.f32.xlu0 %v1586
        %v1714 = vpop.xlane.xlu0 %1713
        %1715 = vadd.xlane.f32.xlu0 %v1588
        %v1716 = vpop.xlane.xlu0 %1715
        %1717 = vadd.xlane.f32.xlu0 %v1590
        %v1718 = vpop.xlane.xlu0 %1717
        %1719 = vadd.xlane.f32.xlu0 %v1592
        %v1720 = vpop.xlane.xlu0 %1719
        %1721 = vadd.xlane.f32.xlu0 %v1594
        %v1722 = vpop.xlane.xlu0 %1721
        %1723 = vadd.xlane.f32.xlu0 %v1596
        %v1724 = vpop.xlane.xlu0 %1723
        %1725 = vadd.xlane.f32.xlu0 %v1598
        %v1726 = vpop.xlane.xlu0 %1725
        %1727 = vadd.xlane.f32.xlu0 %v1600
        %v1728 = vpop.xlane.xlu0 %1727
        %1729 = vadd.xlane.f32.xlu0 %v1602
        %v1730 = vpop.xlane.xlu0 %1729
        %1731 = vadd.xlane.f32.xlu0 %v1604
        %v1732 = vpop.xlane.xlu0 %1731
        %1733 = vadd.xlane.f32.xlu0 %v1606
        %v1734 = vpop.xlane.xlu0 %1733
        %1735 = vadd.xlane.f32.xlu0 %v1608
        %v1736 = vpop.xlane.xlu0 %1735
        %1737 = vadd.xlane.f32.xlu0 %v1610
        %v1738 = vpop.xlane.xlu0 %1737
        %1739 = vadd.xlane.f32.xlu0 %v1612
        %v1740 = vpop.xlane.xlu0 %1739
        %1741 = vadd.xlane.f32.xlu0 %v1614
        %v1742 = vpop.xlane.xlu0 %1741
        %1743 = vadd.xlane.f32.xlu0 %v1616
        %v1744 = vpop.xlane.xlu0 %1743
        %v1745 = vrcp.pop %v1618
        %v1746 = vrcp.pop %v1620
        %v1747 = vrcp.pop %v1622
        %v1748 = vrcp.pop %v1624
        %v1749 = vrcp.pop %v1626
        %v1750 = vrcp.pop %v1628
        %v1751 = vrcp.pop %v1630
        %v1752 = vrcp.pop %v1632
        %v1753 = vrcp.pop %v1634
        %v1754 = vrcp.pop %v1636
        %v1755 = vrcp.pop %v1638
        %v1756 = vrcp.pop %v1640
        %v1757 = vrcp.pop %v1642
        %v1758 = vrcp.pop %v1644
        %v1759 = vrcp.pop %v1646
        %v1760 = vrcp.pop %v1648
        %v1761 = vrcp.pop %v1650
        %v1762 = vrcp.pop %v1652
        %v1763 = vrcp.pop %v1654
        %v1764 = vrcp.pop %v1656
        %v1765 = vrcp.pop %v1658
        %v1766 = vrcp.pop %v1660
        %v1767 = vrcp.pop %v1662
        %v1768 = vrcp.pop %v1664
        %v1769 = vrcp.pop %v1666
        %v1770 = vrcp.pop %v1668
        %v1771 = vrcp.pop %v1670
        %v1772 = vrcp.pop %v1672
        %v1773 = vrcp.pop %v1674
        %v1774 = vrcp.pop %v1676
        %v1775 = vrcp.pop %v1678
        %v1776 = vrcp.pop %v1680
        %v1777 = vrcp.pop %v1682
        %v1778 = vrcp.pop %v1684
        %v1779 = vrcp.pop %v1686
        %v1780 = vrcp.pop %v1688
        %v1781 = vrcp.pop %v1690
        %v1782 = vrcp.pop %v1692
        %v1783 = vrcp.pop %v1694
        %v1784 = vrcp.pop %v1696
        %v1785 = vrcp.pop %v1698
        %v1786 = vrcp.pop %v1700
        %v1787 = vrcp.pop %v1702
        %v1788 = vrcp.pop %v1704
        %v1789 = vrcp.pop %v1706
        %v1790 = vrcp.pop %v1708
        %v1791 = vrcp.pop %v1710
        %v1792 = vrcp.pop %v1712
        %v1793 = vrcp.pop %v1714
        %v1794 = vrcp.pop %v1716
        %v1795 = vrcp.pop %v1718
        %v1796 = vrcp.pop %v1720
        %v1797 = vrcp.pop %v1722
        %v1798 = vrcp.pop %v1724
        %v1799 = vrcp.pop %v1726
        %v1800 = vrcp.pop %v1728
        %v1801 = vrcp.pop %v1730
        %v1802 = vrcp.pop %v1732
        %v1803 = vrcp.pop %v1734
        %v1804 = vrcp.pop %v1736
        %v1805 = vrcp.pop %v1738
        %v1806 = vrcp.pop %v1740
        %v1807 = vrcp.pop %v1742
        %v1808 = vrcp.pop %v1744
        %v1809 = vmul.f32 %v1490, %v1745
        %v1810 = vmul.f32 %v1492, %v1746
        %v1811 = vmul.f32 %v1494, %v1747
        %v1812 = vmul.f32 %v1496, %v1748
        %v1813 = vmul.f32 %v1498, %v1749
        %v1814 = vmul.f32 %v1500, %v1750
        %v1815 = vmul.f32 %v1502, %v1751
        %v1816 = vmul.f32 %v1504, %v1752
        %v1817 = vmul.f32 %v1506, %v1753
        %v1818 = vmul.f32 %v1508, %v1754
        %v1819 = vmul.f32 %v1510, %v1755
        %v1820 = vmul.f32 %v1512, %v1756
        %v1821 = vmul.f32 %v1514, %v1757
        %v1822 = vmul.f32 %v1516, %v1758
        %v1823 = vmul.f32 %v1518, %v1759
        %v1824 = vmul.f32 %v1520, %v1760
        %v1825 = vmul.f32 %v1522, %v1761
        %v1826 = vmul.f32 %v1524, %v1762
        %v1827 = vmul.f32 %v1526, %v1763
        %v1828 = vmul.f32 %v1528, %v1764
        %v1829 = vmul.f32 %v1530, %v1765
        %v1830 = vmul.f32 %v1532, %v1766
        %v1831 = vmul.f32 %v1534, %v1767
        %v1832 = vmul.f32 %v1536, %v1768
        %v1833 = vmul.f32 %v1538, %v1769
        %v1834 = vmul.f32 %v1540, %v1770
        %v1835 = vmul.f32 %v1542, %v1771
        %v1836 = vmul.f32 %v1544, %v1772
        %v1837 = vmul.f32 %v1546, %v1773
        %v1838 = vmul.f32 %v1548, %v1774
        %v1839 = vmul.f32 %v1550, %v1775
        %v1840 = vmul.f32 %v1552, %v1776
        %v1841 = vmul.f32 %v1554, %v1777
        %v1842 = vmul.f32 %v1556, %v1778
        %v1843 = vmul.f32 %v1558, %v1779
        %v1844 = vmul.f32 %v1560, %v1780
        %v1845 = vmul.f32 %v1562, %v1781
        %v1846 = vmul.f32 %v1564, %v1782
        %v1847 = vmul.f32 %v1566, %v1783
        %v1848 = vmul.f32 %v1568, %v1784
        %v1849 = vmul.f32 %v1570, %v1785
        %v1850 = vmul.f32 %v1572, %v1786
        %v1851 = vmul.f32 %v1574, %v1787
        %v1852 = vmul.f32 %v1576, %v1788
        %v1853 = vmul.f32 %v1578, %v1789
        %v1854 = vmul.f32 %v1580, %v1790
        %v1855 = vmul.f32 %v1582, %v1791
        %v1856 = vmul.f32 %v1584, %v1792
        %v1857 = vmul.f32 %v1586, %v1793
        %v1858 = vmul.f32 %v1588, %v1794
        %v1859 = vmul.f32 %v1590, %v1795
        %v1860 = vmul.f32 %v1592, %v1796
        %v1861 = vmul.f32 %v1594, %v1797
        %v1862 = vmul.f32 %v1596, %v1798
        %v1863 = vmul.f32 %v1598, %v1799
        %v1864 = vmul.f32 %v1600, %v1800
        %v1865 = vmul.f32 %v1602, %v1801
        %v1866 = vmul.f32 %v1604, %v1802
        %v1867 = vmul.f32 %v1606, %v1803
        %v1868 = vmul.f32 %v1608, %v1804
        %v1869 = vmul.f32 %v1610, %v1805
        %v1870 = vmul.f32 %v1612, %v1806
        %v1871 = vmul.f32 %v1614, %v1807
        %v1872 = vmul.f32 %v1616, %v1808
        %v1873 = vld [vmem:[%s334] sm:$0xff]
        %v1874 = vld [vmem:[%s334 + $0x8] sm:$0xff]
        %v1875 = vld [vmem:[%s334 + $0x10] sm:$0xff]
        %v1876 = vld [vmem:[%s334 + $0x18] sm:$0xff]
        %v1877 = vld [vmem:[%s334 + $0x20] sm:$0xff]
        %v1878 = vld [vmem:[%s334 + $0x28] sm:$0xff]
        %v1879 = vld [vmem:[%s334 + $0x30] sm:$0xff]
        %v1880 = vld [vmem:[%s334 + $0x38] sm:$0xff]
        %v1881 = vld [vmem:[%s334 + $0x40] sm:$0xff]
        %v1882 = vld [vmem:[%s334 + $0x48] sm:$0xff]
        %v1883 = vld [vmem:[%s334 + $0x50] sm:$0xff]
        %v1884 = vld [vmem:[%s334 + $0x58] sm:$0xff]
        %v1885 = vld [vmem:[%s334 + $0x60] sm:$0xff]
        %v1886 = vld [vmem:[%s334 + $0x68] sm:$0xff]
        %v1887 = vld [vmem:[%s334 + $0x70] sm:$0xff]
        %v1888 = vld [vmem:[%s334 + $0x78] sm:$0xff]
        %v1889 = vld [vmem:[%s334 + $0x80] sm:$0xff]
        %v1890 = vld [vmem:[%s334 + $0x88] sm:$0xff]
        %v1891 = vld [vmem:[%s334 + $0x90] sm:$0xff]
        %v1892 = vld [vmem:[%s334 + $0x98] sm:$0xff]
        %v1893 = vld [vmem:[%s334 + $0xa0] sm:$0xff]
        %v1894 = vld [vmem:[%s334 + $0xa8] sm:$0xff]
        %v1895 = vld [vmem:[%s334 + $0xb0] sm:$0xff]
        %v1896 = vld [vmem:[%s334 + $0xb8] sm:$0xff]
        %v1897 = vld [vmem:[%s334 + $0xc0] sm:$0xff]
        %v1898 = vld [vmem:[%s334 + $0xc8] sm:$0xff]
        %v1899 = vld [vmem:[%s334 + $0xd0] sm:$0xff]
        %v1900 = vld [vmem:[%s334 + $0xd8] sm:$0xff]
        %v1901 = vld [vmem:[%s334 + $0xe0] sm:$0xff]
        %v1902 = vld [vmem:[%s334 + $0xe8] sm:$0xff]
        %v1903 = vld [vmem:[%s334 + $0xf0] sm:$0xff]
        %v1904 = vld [vmem:[%s334 + $0xf8] sm:$0xff]
        %v1905 = vld [vmem:[%s334 + $0x100] sm:$0xff]
        %v1906 = vld [vmem:[%s334 + $0x108] sm:$0xff]
        %v1907 = vld [vmem:[%s334 + $0x110] sm:$0xff]
        %v1908 = vld [vmem:[%s334 + $0x118] sm:$0xff]
        %v1909 = vld [vmem:[%s334 + $0x120] sm:$0xff]
        %v1910 = vld [vmem:[%s334 + $0x128] sm:$0xff]
        %v1911 = vld [vmem:[%s334 + $0x130] sm:$0xff]
        %v1912 = vld [vmem:[%s334 + $0x138] sm:$0xff]
        %v1913 = vld [vmem:[%s334 + $0x140] sm:$0xff]
        %v1914 = vld [vmem:[%s334 + $0x148] sm:$0xff]
        %v1915 = vld [vmem:[%s334 + $0x150] sm:$0xff]
        %v1916 = vld [vmem:[%s334 + $0x158] sm:$0xff]
        %v1917 = vld [vmem:[%s334 + $0x160] sm:$0xff]
        %v1918 = vld [vmem:[%s334 + $0x168] sm:$0xff]
        %v1919 = vld [vmem:[%s334 + $0x170] sm:$0xff]
        %v1920 = vld [vmem:[%s334 + $0x178] sm:$0xff]
        %v1921 = vld [vmem:[%s334 + $0x180] sm:$0xff]
        %v1922 = vld [vmem:[%s334 + $0x188] sm:$0xff]
        %v1923 = vld [vmem:[%s334 + $0x190] sm:$0xff]
        %v1924 = vld [vmem:[%s334 + $0x198] sm:$0xff]
        %v1925 = vld [vmem:[%s334 + $0x1a0] sm:$0xff]
        %v1926 = vld [vmem:[%s334 + $0x1a8] sm:$0xff]
        %v1927 = vld [vmem:[%s334 + $0x1b0] sm:$0xff]
        %v1928 = vld [vmem:[%s334 + $0x1b8] sm:$0xff]
        %v1929 = vld [vmem:[%s334 + $0x1c0] sm:$0xff]
        %v1930 = vld [vmem:[%s334 + $0x1c8] sm:$0xff]
        %v1931 = vld [vmem:[%s334 + $0x1d0] sm:$0xff]
        %v1932 = vld [vmem:[%s334 + $0x1d8] sm:$0xff]
        %v1933 = vld [vmem:[%s334 + $0x1e0] sm:$0xff]
        %v1934 = vld [vmem:[%s334 + $0x1e8] sm:$0xff]
        %v1935 = vld [vmem:[%s334 + $0x1f0] sm:$0xff]
        %v1936 = vld [vmem:[%s334 + $0x1f8] sm:$0xff]
        %vm1937 = vcmp.ge.f32.partialorder %v1873, 0.7
        %vm1938 = vcmp.ge.f32.partialorder %v1874, 0.7
        %vm1939 = vcmp.ge.f32.partialorder %v1875, 0.7
        %vm1940 = vcmp.ge.f32.partialorder %v1876, 0.7
        %vm1941 = vcmp.ge.f32.partialorder %v1877, 0.7
        %vm1942 = vcmp.ge.f32.partialorder %v1878, 0.7
        %vm1943 = vcmp.ge.f32.partialorder %v1879, 0.7
        %vm1944 = vcmp.ge.f32.partialorder %v1880, 0.7
        %vm1945 = vcmp.ge.f32.partialorder %v1881, 0.7
        %vm1946 = vcmp.ge.f32.partialorder %v1882, 0.7
        %vm1947 = vcmp.ge.f32.partialorder %v1883, 0.7
        %vm1948 = vcmp.ge.f32.partialorder %v1884, 0.7
        %vm1949 = vcmp.ge.f32.partialorder %v1885, 0.7
        %vm1950 = vcmp.ge.f32.partialorder %v1886, 0.7
        %vm1951 = vcmp.ge.f32.partialorder %v1887, 0.7
        %vm1952 = vcmp.ge.f32.partialorder %v1888, 0.7
        %vm1953 = vcmp.ge.f32.partialorder %v1889, 0.7
        %vm1954 = vcmp.ge.f32.partialorder %v1890, 0.7
        %vm1955 = vcmp.ge.f32.partialorder %v1891, 0.7
        %vm1956 = vcmp.ge.f32.partialorder %v1892, 0.7
        %vm1957 = vcmp.ge.f32.partialorder %v1893, 0.7
        %vm1958 = vcmp.ge.f32.partialorder %v1894, 0.7
        %vm1959 = vcmp.ge.f32.partialorder %v1895, 0.7
        %vm1960 = vcmp.ge.f32.partialorder %v1896, 0.7
        %vm1961 = vcmp.ge.f32.partialorder %v1897, 0.7
        %vm1962 = vcmp.ge.f32.partialorder %v1898, 0.7
        %vm1963 = vcmp.ge.f32.partialorder %v1899, 0.7
        %vm1964 = vcmp.ge.f32.partialorder %v1900, 0.7
        %vm1965 = vcmp.ge.f32.partialorder %v1901, 0.7
        %vm1966 = vcmp.ge.f32.partialorder %v1902, 0.7
        %vm1967 = vcmp.ge.f32.partialorder %v1903, 0.7
        %vm1968 = vcmp.ge.f32.partialorder %v1904, 0.7
        %vm1969 = vcmp.ge.f32.partialorder %v1905, 0.7
        %vm1970 = vcmp.ge.f32.partialorder %v1906, 0.7
        %vm1971 = vcmp.ge.f32.partialorder %v1907, 0.7
        %vm1972 = vcmp.ge.f32.partialorder %v1908, 0.7
        %vm1973 = vcmp.ge.f32.partialorder %v1909, 0.7
        %vm1974 = vcmp.ge.f32.partialorder %v1910, 0.7
        %vm1975 = vcmp.ge.f32.partialorder %v1911, 0.7
        %vm1976 = vcmp.ge.f32.partialorder %v1912, 0.7
        %vm1977 = vcmp.ge.f32.partialorder %v1913, 0.7
        %vm1978 = vcmp.ge.f32.partialorder %v1914, 0.7
        %vm1979 = vcmp.ge.f32.partialorder %v1915, 0.7
        %vm1980 = vcmp.ge.f32.partialorder %v1916, 0.7
        %vm1981 = vcmp.ge.f32.partialorder %v1917, 0.7
        %vm1982 = vcmp.ge.f32.partialorder %v1918, 0.7
        %vm1983 = vcmp.ge.f32.partialorder %v1919, 0.7
        %vm1984 = vcmp.ge.f32.partialorder %v1920, 0.7
        %vm1985 = vcmp.ge.f32.partialorder %v1921, 0.7
        %vm1986 = vcmp.ge.f32.partialorder %v1922, 0.7
        %vm1987 = vcmp.ge.f32.partialorder %v1923, 0.7
        %vm1988 = vcmp.ge.f32.partialorder %v1924, 0.7
        %vm1989 = vcmp.ge.f32.partialorder %v1925, 0.7
        %vm1990 = vcmp.ge.f32.partialorder %v1926, 0.7
        %vm1991 = vcmp.ge.f32.partialorder %v1927, 0.7
        %vm1992 = vcmp.ge.f32.partialorder %v1928, 0.7
        %vm1993 = vcmp.ge.f32.partialorder %v1929, 0.7
        %vm1994 = vcmp.ge.f32.partialorder %v1930, 0.7
        %vm1995 = vcmp.ge.f32.partialorder %v1931, 0.7
        %vm1996 = vcmp.ge.f32.partialorder %v1932, 0.7
        %vm1997 = vcmp.ge.f32.partialorder %v1933, 0.7
        %vm1998 = vcmp.ge.f32.partialorder %v1934, 0.7
        %vm1999 = vcmp.ge.f32.partialorder %v1935, 0.7
        %vm2000 = vcmp.ge.f32.partialorder %v1936, 0.7
        %v2001 = vmul.f32 %v1809, 3.3333333
        %v2002 = vmul.f32 %v1810, 3.3333333
        %v2003 = vmul.f32 %v1811, 3.3333333
        %v2004 = vmul.f32 %v1812, 3.3333333
        %v2005 = vmul.f32 %v1813, 3.3333333
        %v2006 = vmul.f32 %v1814, 3.3333333
        %v2007 = vmul.f32 %v1815, 3.3333333
        %v2008 = vmul.f32 %v1816, 3.3333333
        %v2009 = vmul.f32 %v1817, 3.3333333
        %v2010 = vmul.f32 %v1818, 3.3333333
        %v2011 = vmul.f32 %v1819, 3.3333333
        %v2012 = vmul.f32 %v1820, 3.3333333
        %v2013 = vmul.f32 %v1821, 3.3333333
        %v2014 = vmul.f32 %v1822, 3.3333333
        %v2015 = vmul.f32 %v1823, 3.3333333
        %v2016 = vmul.f32 %v1824, 3.3333333
        %v2017 = vmul.f32 %v1825, 3.3333333
        %v2018 = vmul.f32 %v1826, 3.3333333
        %v2019 = vmul.f32 %v1827, 3.3333333
        %v2020 = vmul.f32 %v1828, 3.3333333
        %v2021 = vmul.f32 %v1829, 3.3333333
        %v2022 = vmul.f32 %v1830, 3.3333333
        %v2023 = vmul.f32 %v1831, 3.3333333
        %v2024 = vmul.f32 %v1832, 3.3333333
        %v2025 = vmul.f32 %v1833, 3.3333333
        %v2026 = vmul.f32 %v1834, 3.3333333
        %v2027 = vmul.f32 %v1835, 3.3333333
        %v2028 = vmul.f32 %v1836, 3.3333333
        %v2029 = vmul.f32 %v1837, 3.3333333
        %v2030 = vmul.f32 %v1838, 3.3333333
        %v2031 = vmul.f32 %v1839, 3.3333333
        %v2032 = vmul.f32 %v1840, 3.3333333
        %v2033 = vmul.f32 %v1841, 3.3333333
        %v2034 = vmul.f32 %v1842, 3.3333333
        %v2035 = vmul.f32 %v1843, 3.3333333
        %v2036 = vmul.f32 %v1844, 3.3333333
        %v2037 = vmul.f32 %v1845, 3.3333333
        %v2038 = vmul.f32 %v1846, 3.3333333
        %v2039 = vmul.f32 %v1847, 3.3333333
        %v2040 = vmul.f32 %v1848, 3.3333333
        %v2041 = vmul.f32 %v1849, 3.3333333
        %v2042 = vmul.f32 %v1850, 3.3333333
        %v2043 = vmul.f32 %v1851, 3.3333333
        %v2044 = vmul.f32 %v1852, 3.3333333
        %v2045 = vmul.f32 %v1853, 3.3333333
        %v2046 = vmul.f32 %v1854, 3.3333333
        %v2047 = vmul.f32 %v1855, 3.3333333
        %v2048 = vmul.f32 %v1856, 3.3333333
        %v2049 = vmul.f32 %v1857, 3.3333333
        %v2050 = vmul.f32 %v1858, 3.3333333
        %v2051 = vmul.f32 %v1859, 3.3333333
        %v2052 = vmul.f32 %v1860, 3.3333333
        %v2053 = vmul.f32 %v1861, 3.3333333
        %v2054 = vmul.f32 %v1862, 3.3333333
        %v2055 = vmul.f32 %v1863, 3.3333333
        %v2056 = vmul.f32 %v1864, 3.3333333
        %v2057 = vmul.f32 %v1865, 3.3333333
        %v2058 = vmul.f32 %v1866, 3.3333333
        %v2059 = vmul.f32 %v1867, 3.3333333
        %v2060 = vmul.f32 %v1868, 3.3333333
        %v2061 = vmul.f32 %v1869, 3.3333333
        %v2062 = vmul.f32 %v1870, 3.3333333
        %v2063 = vmul.f32 %v1871, 3.3333333
        %v2064 = vmul.f32 %v1872, 3.3333333
        %v2065 = vsel %vm1937, %v2001, 0.0
        %v2066 = vsel %vm1938, %v2002, 0.0
        %v2067 = vsel %vm1939, %v2003, 0.0
        %v2068 = vsel %vm1940, %v2004, 0.0
        %v2069 = vsel %vm1941, %v2005, 0.0
        %v2070 = vsel %vm1942, %v2006, 0.0
        %v2071 = vsel %vm1943, %v2007, 0.0
        %v2072 = vsel %vm1944, %v2008, 0.0
        %v2073 = vsel %vm1945, %v2009, 0.0
        %v2074 = vsel %vm1946, %v2010, 0.0
        %v2075 = vsel %vm1947, %v2011, 0.0
        %v2076 = vsel %vm1948, %v2012, 0.0
        %v2077 = vsel %vm1949, %v2013, 0.0
        %v2078 = vsel %vm1950, %v2014, 0.0
        %v2079 = vsel %vm1951, %v2015, 0.0
        %v2080 = vsel %vm1952, %v2016, 0.0
        %v2081 = vsel %vm1953, %v2017, 0.0
        %v2082 = vsel %vm1954, %v2018, 0.0
        %v2083 = vsel %vm1955, %v2019, 0.0
        %v2084 = vsel %vm1956, %v2020, 0.0
        %v2085 = vsel %vm1957, %v2021, 0.0
        %v2086 = vsel %vm1958, %v2022, 0.0
        %v2087 = vsel %vm1959, %v2023, 0.0
        %v2088 = vsel %vm1960, %v2024, 0.0
        %v2089 = vsel %vm1961, %v2025, 0.0
        %v2090 = vsel %vm1962, %v2026, 0.0
        %v2091 = vsel %vm1963, %v2027, 0.0
        %v2092 = vsel %vm1964, %v2028, 0.0
        %v2093 = vsel %vm1965, %v2029, 0.0
        %v2094 = vsel %vm1966, %v2030, 0.0
        %v2095 = vsel %vm1967, %v2031, 0.0
        %v2096 = vsel %vm1968, %v2032, 0.0
        %v2097 = vsel %vm1969, %v2033, 0.0
        %v2098 = vsel %vm1970, %v2034, 0.0
        %v2099 = vsel %vm1971, %v2035, 0.0
        %v2100 = vsel %vm1972, %v2036, 0.0
        %v2101 = vsel %vm1973, %v2037, 0.0
        %v2102 = vsel %vm1974, %v2038, 0.0
        %v2103 = vsel %vm1975, %v2039, 0.0
        %v2104 = vsel %vm1976, %v2040, 0.0
        %v2105 = vsel %vm1977, %v2041, 0.0
        %v2106 = vsel %vm1978, %v2042, 0.0
        %v2107 = vsel %vm1979, %v2043, 0.0
        %v2108 = vsel %vm1980, %v2044, 0.0
        %v2109 = vsel %vm1981, %v2045, 0.0
        %v2110 = vsel %vm1982, %v2046, 0.0
        %v2111 = vsel %vm1983, %v2047, 0.0
        %v2112 = vsel %vm1984, %v2048, 0.0
        %v2113 = vsel %vm1985, %v2049, 0.0
        %v2114 = vsel %vm1986, %v2050, 0.0
        %v2115 = vsel %vm1987, %v2051, 0.0
        %v2116 = vsel %vm1988, %v2052, 0.0
        %v2117 = vsel %vm1989, %v2053, 0.0
        %v2118 = vsel %vm1990, %v2054, 0.0
        %v2119 = vsel %vm1991, %v2055, 0.0
        %v2120 = vsel %vm1992, %v2056, 0.0
        %v2121 = vsel %vm1993, %v2057, 0.0
        %v2122 = vsel %vm1994, %v2058, 0.0
        %v2123 = vsel %vm1995, %v2059, 0.0
        %v2124 = vsel %vm1996, %v2060, 0.0
        %v2125 = vsel %vm1997, %v2061, 0.0
        %v2126 = vsel %vm1998, %v2062, 0.0
        %v2127 = vsel %vm1999, %v2063, 0.0
        %v2128 = vsel %vm2000, %v2064, 0.0
        %2129 = vmatprep.subr.mxu0 0.0
        %2130 = vmatpush1.msra.mxu0 %v509
        %2131 = vmatprep.subr.mxu0 0.0
        %2132 = vmatpush1.msra.mxu0 %v510
        %2133 = vmatprep.subr.mxu0 0.0
        %2134 = vmatpush1.msra.mxu0 %v511
        %2135 = vmatprep.subr.mxu0 0.0
        %2136 = vmatpush1.msra.mxu0 %v512
        %2137 = vmatprep.subr.mxu0 0.0
        %2138 = vmatpush1.msra.mxu0 %v513
        %2139 = vmatprep.subr.mxu0 0.0
        %2140 = vmatpush1.msra.mxu0 %v514
        %2141 = vmatprep.subr.mxu0 0.0
        %2142 = vmatpush1.msra.mxu0 %v515
        %2143 = vmatprep.subr.mxu0 0.0
        %2144 = vmatpush1.msra.mxu0 %v516
        %2145 = vmatprep.subr.mxu0 0.0
        %2146 = vmatpush1.msra.mxu0 %v517
        %2147 = vmatprep.subr.mxu0 0.0
        %2148 = vmatpush1.msra.mxu0 %v518
        %2149 = vmatprep.subr.mxu0 0.0
        %2150 = vmatpush1.msra.mxu0 %v519
        %2151 = vmatprep.subr.mxu0 0.0
        %2152 = vmatpush1.msra.mxu0 %v520
        %2153 = vmatprep.subr.mxu0 0.0
        %2154 = vmatpush1.msra.mxu0 %v521
        %2155 = vmatprep.subr.mxu0 0.0
        %2156 = vmatpush1.msra.mxu0 %v522
        %2157 = vmatprep.subr.mxu0 0.0
        %2158 = vmatpush1.msra.mxu0 %v523
        %2159 = vmatprep.subr.mxu0 0.0
        %2160 = vmatpush1.msra.mxu0 %v524
        %2161 = vmatprep.subr.mxu0 0.0
        %2162 = vmatpush1.msra.mxu0 0.0
        %2163 = vmatprep.subr.mxu0 0.0
        %2164 = vmatpush1.msra.mxu0 0.0
        %2165 = vmatprep.subr.mxu0 0.0
        %2166 = vmatpush1.msra.mxu0 0.0
        %2167 = vmatprep.subr.mxu0 0.0
        %2168 = vmatpush1.msra.mxu0 0.0
        %2169 = vmatprep.subr.mxu0 0.0
        %2170 = vmatpush1.msra.mxu0 0.0
        %2171 = vmatprep.subr.mxu0 0.0
        %2172 = vmatpush1.msra.mxu0 0.0
        %2173 = vmatprep.subr.mxu0 0.0
        %2174 = vmatpush1.msra.mxu0 0.0
        %2175 = vmatprep.subr.mxu0 0.0
        %2176 = vmatpush1.msra.mxu0 0.0
        %2177 = vmatprep.subr.mxu0 0.0
        %2178 = vmatpush1.msra.mxu0 0.0
        %2179 = vmatprep.subr.mxu0 0.0
        %2180 = vmatpush1.msra.mxu0 0.0
        %2181 = vmatprep.subr.mxu0 0.0
        %2182 = vmatpush1.msra.mxu0 0.0
        %2183 = vmatprep.subr.mxu0 0.0
        %2184 = vmatpush1.msra.mxu0 0.0
        %2185 = vmatprep.subr.mxu0 0.0
        %2186 = vmatpush1.msra.mxu0 0.0
        %2187 = vmatprep.subr.mxu0 0.0
        %2188 = vmatpush1.msra.mxu0 0.0
        %2189 = vmatprep.subr.mxu0 0.0
        %2190 = vmatpush1.msra.mxu0 0.0
        %2191 = vmatprep.subr.mxu0 0.0
        %2192 = vmatpush1.msra.mxu0 0.0
        %2193 = vmatprep.mubr.f32.mxu0 0.0
        %2194 = vmatmul.mubr.f32.gmra.mrb[0].mxu0 %v2065
        %v2195 = vpop.f32.mrb[0].mxu0
        %v2196 = vadd.f32 0.0, %v2195
        %v2197 = vpop.f32.mrb[0].mxu0
        %2198 = vmatprep.mubr.f32.mxu0 0.0
        %2199 = vmatmul.mubr.f32.gmra.mrb[0].mxu0 %v2066
        %v2200 = vpop.f32.mrb[0].mxu0
        %v2201 = vadd.f32 0.0, %v2200
        %v2202 = vpop.f32.mrb[0].mxu0
        %2203 = vmatprep.mubr.f32.mxu0 0.0
        %2204 = vmatmul.mubr.f32.gmra.mrb[0].mxu0 %v2067
        %v2205 = vpop.f32.mrb[0].mxu0
        %v2206 = vadd.f32 0.0, %v2205
        %v2207 = vpop.f32.mrb[0].mxu0
        %2208 = vmatprep.mubr.f32.mxu0 0.0
        %2209 = vmatmul.mubr.f32.gmra.mrb[0].mxu0 %v2068
        %v2210 = vpop.f32.mrb[0].mxu0
        %v2211 = vadd.f32 0.0, %v2210
        %v2212 = vpop.f32.mrb[0].mxu0
        %2213 = vmatprep.mubr.f32.mxu0 0.0
        %2214 = vmatmul.mubr.f32.gmra.mrb[0].mxu0 %v2069
        %v2215 = vpop.f32.mrb[0].mxu0
        %v2216 = vadd.f32 0.0, %v2215
        %v2217 = vpop.f32.mrb[0].mxu0
        %2218 = vmatprep.mubr.f32.mxu0 0.0
        %2219 = vmatmul.mubr.f32.gmra.mrb[0].mxu0 %v2070
        %v2220 = vpop.f32.mrb[0].mxu0
        %v2221 = vadd.f32 0.0, %v2220
        %v2222 = vpop.f32.mrb[0].mxu0
        %2223 = vmatprep.mubr.f32.mxu0 0.0
        %2224 = vmatmul.mubr.f32.gmra.mrb[0].mxu0 %v2071
        %v2225 = vpop.f32.mrb[0].mxu0
        %v2226 = vadd.f32 0.0, %v2225
        %v2227 = vpop.f32.mrb[0].mxu0
        %2228 = vmatprep.mubr.f32.mxu0 0.0
        %2229 = vmatmul.mubr.f32.gmra.mrb[0].mxu0 %v2072
        %v2230 = vpop.f32.mrb[0].mxu0
        %v2231 = vadd.f32 0.0, %v2230
        %v2232 = vpop.f32.mrb[0].mxu0
        %2233 = vmatprep.mubr.f32.mxu0 0.0
        %2234 = vmatmul.mubr.f32.gmra.mrb[0].mxu0 %v2073
        %v2235 = vpop.f32.mrb[0].mxu0
        %v2236 = vadd.f32 0.0, %v2235
        %v2237 = vpop.f32.mrb[0].mxu0
        %2238 = vmatprep.mubr.f32.mxu0 0.0
        %2239 = vmatmul.mubr.f32.gmra.mrb[0].mxu0 %v2074
        %v2240 = vpop.f32.mrb[0].mxu0
        %v2241 = vadd.f32 0.0, %v2240
        %v2242 = vpop.f32.mrb[0].mxu0
        %2243 = vmatprep.mubr.f32.mxu0 0.0
        %2244 = vmatmul.mubr.f32.gmra.mrb[0].mxu0 %v2075
        %v2245 = vpop.f32.mrb[0].mxu0
        %v2246 = vadd.f32 0.0, %v2245
        %v2247 = vpop.f32.mrb[0].mxu0
        %2248 = vmatprep.mubr.f32.mxu0 0.0
        %2249 = vmatmul.mubr.f32.gmra.mrb[0].mxu0 %v2076
        %v2250 = vpop.f32.mrb[0].mxu0
        %v2251 = vadd.f32 0.0, %v2250
        %v2252 = vpop.f32.mrb[0].mxu0
        %2253 = vmatprep.mubr.f32.mxu0 0.0
        %2254 = vmatmul.mubr.f32.gmra.mrb[0].mxu0 %v2077
        %v2255 = vpop.f32.mrb[0].mxu0
        %v2256 = vadd.f32 0.0, %v2255
        %v2257 = vpop.f32.mrb[0].mxu0
        %2258 = vmatprep.mubr.f32.mxu0 0.0
        %2259 = vmatmul.mubr.f32.gmra.mrb[0].mxu0 %v2078
        %v2260 = vpop.f32.mrb[0].mxu0
        %v2261 = vadd.f32 0.0, %v2260
        %v2262 = vpop.f32.mrb[0].mxu0
        %2263 = vmatprep.mubr.f32.mxu0 0.0
        %2264 = vmatmul.mubr.f32.gmra.mrb[0].mxu0 %v2079
        %v2265 = vpop.f32.mrb[0].mxu0
        %v2266 = vadd.f32 0.0, %v2265
        %v2267 = vpop.f32.mrb[0].mxu0
        %2268 = vmatprep.mubr.f32.mxu0 0.0
        %2269 = vmatmul.mubr.f32.gmra.mrb[0].mxu0 %v2080
        %v2270 = vpop.f32.mrb[0].mxu0
        %v2271 = vadd.f32 0.0, %v2270
        %v2272 = vpop.f32.mrb[0].mxu0
        %2273 = vdwg.mxu0
        %2274 = vmatprep.subr.mxu0 0.0
        %2275 = vmatpush1.msra.mxu0 %v525
        %2276 = vmatprep.subr.mxu0 0.0
        %2277 = vmatpush1.msra.mxu0 %v526
        %2278 = vmatprep.subr.mxu0 0.0
        %2279 = vmatpush1.msra.mxu0 %v527
        %2280 = vmatprep.subr.mxu0 0.0
        %2281 = vmatpush1.msra.mxu0 %v528
        %2282 = vmatprep.subr.mxu0 0.0
        %2283 = vmatpush1.msra.mxu0 %v529
        %2284 = vmatprep.subr.mxu0 0.0
        %2285 = vmatpush1.msra.mxu0 %v530
        %2286 = vmatprep.subr.mxu0 0.0
        %2287 = vmatpush1.msra.mxu0 %v531
        %2288 = vmatprep.subr.mxu0 0.0
        %2289 = vmatpush1.msra.mxu0 %v532
        %2290 = vmatprep.subr.mxu0 0.0
        %2291 = vmatpush1.msra.mxu0 %v533
        %2292 = vmatprep.subr.mxu0 0.0
        %2293 = vmatpush1.msra.mxu0 %v534
        %2294 = vmatprep.subr.mxu0 0.0
        %2295 = vmatpush1.msra.mxu0 %v535
        %2296 = vmatprep.subr.mxu0 0.0
        %2297 = vmatpush1.msra.mxu0 %v536
        %2298 = vmatprep.subr.mxu0 0.0
        %2299 = vmatpush1.msra.mxu0 %v537
        %2300 = vmatprep.subr.mxu0 0.0
        %2301 = vmatpush1.msra.mxu0 %v538
        %2302 = vmatprep.subr.mxu0 0.0
        %2303 = vmatpush1.msra.mxu0 %v539
        %2304 = vmatprep.subr.mxu0 0.0
        %2305 = vmatpush1.msra.mxu0 %v540
        %2306 = vmatprep.subr.mxu0 0.0
        %2307 = vmatpush1.msra.mxu0 0.0
        %2308 = vmatprep.subr.mxu0 0.0
        %2309 = vmatpush1.msra.mxu0 0.0
        %2310 = vmatprep.subr.mxu0 0.0
        %2311 = vmatpush1.msra.mxu0 0.0
        %2312 = vmatprep.subr.mxu0 0.0
        %2313 = vmatpush1.msra.mxu0 0.0
        %2314 = vmatprep.subr.mxu0 0.0
        %2315 = vmatpush1.msra.mxu0 0.0
        %2316 = vmatprep.subr.mxu0 0.0
        %2317 = vmatpush1.msra.mxu0 0.0
        %2318 = vmatprep.subr.mxu0 0.0
        %2319 = vmatpush1.msra.mxu0 0.0
        %2320 = vmatprep.subr.mxu0 0.0
        %2321 = vmatpush1.msra.mxu0 0.0
        %2322 = vmatprep.subr.mxu0 0.0
        %2323 = vmatpush1.msra.mxu0 0.0
        %2324 = vmatprep.subr.mxu0 0.0
        %2325 = vmatpush1.msra.mxu0 0.0
        %2326 = vmatprep.subr.mxu0 0.0
        %2327 = vmatpush1.msra.mxu0 0.0
        %2328 = vmatprep.subr.mxu0 0.0
        %2329 = vmatpush1.msra.mxu0 0.0
        %2330 = vmatprep.subr.mxu0 0.0
        %2331 = vmatpush1.msra.mxu0 0.0
        %2332 = vmatprep.subr.mxu0 0.0
        %2333 = vmatpush1.msra.mxu0 0.0
        %2334 = vmatprep.subr.mxu0 0.0
        %2335 = vmatpush1.msra.mxu0 0.0
        %2336 = vmatprep.subr.mxu0 0.0
        %2337 = vmatpush1.msra.mxu0 0.0
        %2338 = vmatprep.mubr.f32.mxu0 0.0
        %2339 = vmatmul.mubr.f32.gmra.mrb[0].mxu0 %v2081
        %v2340 = vpop.f32.mrb[0].mxu0
        %v2341 = vadd.f32 0.0, %v2340
        %v2342 = vpop.f32.mrb[0].mxu0
        %2343 = vmatprep.mubr.f32.mxu0 0.0
        %2344 = vmatmul.mubr.f32.gmra.mrb[0].mxu0 %v2082
        %v2345 = vpop.f32.mrb[0].mxu0
        %v2346 = vadd.f32 0.0, %v2345
        %v2347 = vpop.f32.mrb[0].mxu0
        %2348 = vmatprep.mubr.f32.mxu0 0.0
        %2349 = vmatmul.mubr.f32.gmra.mrb[0].mxu0 %v2083
        %v2350 = vpop.f32.mrb[0].mxu0
        %v2351 = vadd.f32 0.0, %v2350
        %v2352 = vpop.f32.mrb[0].mxu0
        %2353 = vmatprep.mubr.f32.mxu0 0.0
        %2354 = vmatmul.mubr.f32.gmra.mrb[0].mxu0 %v2084
        %v2355 = vpop.f32.mrb[0].mxu0
        %v2356 = vadd.f32 0.0, %v2355
        %v2357 = vpop.f32.mrb[0].mxu0
        %2358 = vmatprep.mubr.f32.mxu0 0.0
        %2359 = vmatmul.mubr.f32.gmra.mrb[0].mxu0 %v2085
        %v2360 = vpop.f32.mrb[0].mxu0
        %v2361 = vadd.f32 0.0, %v2360
        %v2362 = vpop.f32.mrb[0].mxu0
        %2363 = vmatprep.mubr.f32.mxu0 0.0
        %2364 = vmatmul.mubr.f32.gmra.mrb[0].mxu0 %v2086
        %v2365 = vpop.f32.mrb[0].mxu0
        %v2366 = vadd.f32 0.0, %v2365
        %v2367 = vpop.f32.mrb[0].mxu0
        %2368 = vmatprep.mubr.f32.mxu0 0.0
        %2369 = vmatmul.mubr.f32.gmra.mrb[0].mxu0 %v2087
        %v2370 = vpop.f32.mrb[0].mxu0
        %v2371 = vadd.f32 0.0, %v2370
        %v2372 = vpop.f32.mrb[0].mxu0
        %2373 = vmatprep.mubr.f32.mxu0 0.0
        %2374 = vmatmul.mubr.f32.gmra.mrb[0].mxu0 %v2088
        %v2375 = vpop.f32.mrb[0].mxu0
        %v2376 = vadd.f32 0.0, %v2375
        %v2377 = vpop.f32.mrb[0].mxu0
        %2378 = vmatprep.mubr.f32.mxu0 0.0
        %2379 = vmatmul.mubr.f32.gmra.mrb[0].mxu0 %v2089
        %v2380 = vpop.f32.mrb[0].mxu0
        %v2381 = vadd.f32 0.0, %v2380
        %v2382 = vpop.f32.mrb[0].mxu0
        %2383 = vmatprep.mubr.f32.mxu0 0.0
        %2384 = vmatmul.mubr.f32.gmra.mrb[0].mxu0 %v2090
        %v2385 = vpop.f32.mrb[0].mxu0
        %v2386 = vadd.f32 0.0, %v2385
        %v2387 = vpop.f32.mrb[0].mxu0
        %2388 = vmatprep.mubr.f32.mxu0 0.0
        %2389 = vmatmul.mubr.f32.gmra.mrb[0].mxu0 %v2091
        %v2390 = vpop.f32.mrb[0].mxu0
        %v2391 = vadd.f32 0.0, %v2390
        %v2392 = vpop.f32.mrb[0].mxu0
        %2393 = vmatprep.mubr.f32.mxu0 0.0
        %2394 = vmatmul.mubr.f32.gmra.mrb[0].mxu0 %v2092
        %v2395 = vpop.f32.mrb[0].mxu0
        %v2396 = vadd.f32 0.0, %v2395
        %v2397 = vpop.f32.mrb[0].mxu0
        %2398 = vmatprep.mubr.f32.mxu0 0.0
        %2399 = vmatmul.mubr.f32.gmra.mrb[0].mxu0 %v2093
        %v2400 = vpop.f32.mrb[0].mxu0
        %v2401 = vadd.f32 0.0, %v2400
        %v2402 = vpop.f32.mrb[0].mxu0
        %2403 = vmatprep.mubr.f32.mxu0 0.0
        %2404 = vmatmul.mubr.f32.gmra.mrb[0].mxu0 %v2094
        %v2405 = vpop.f32.mrb[0].mxu0
        %v2406 = vadd.f32 0.0, %v2405
        %v2407 = vpop.f32.mrb[0].mxu0
        %2408 = vmatprep.mubr.f32.mxu0 0.0
        %2409 = vmatmul.mubr.f32.gmra.mrb[0].mxu0 %v2095
        %v2410 = vpop.f32.mrb[0].mxu0
        %v2411 = vadd.f32 0.0, %v2410
        %v2412 = vpop.f32.mrb[0].mxu0
        %2413 = vmatprep.mubr.f32.mxu0 0.0
        %2414 = vmatmul.mubr.f32.gmra.mrb[0].mxu0 %v2096
        %v2415 = vpop.f32.mrb[0].mxu0
        %v2416 = vadd.f32 0.0, %v2415
        %v2417 = vpop.f32.mrb[0].mxu0
        %2418 = vdwg.mxu0
        %2419 = vmatprep.subr.mxu0 0.0
        %2420 = vmatpush1.msra.mxu0 %v541
        %2421 = vmatprep.subr.mxu0 0.0
        %2422 = vmatpush1.msra.mxu0 %v542
        %2423 = vmatprep.subr.mxu0 0.0
        %2424 = vmatpush1.msra.mxu0 %v543
        %2425 = vmatprep.subr.mxu0 0.0
        %2426 = vmatpush1.msra.mxu0 %v544
        %2427 = vmatprep.subr.mxu0 0.0
        %2428 = vmatpush1.msra.mxu0 %v545
        %2429 = vmatprep.subr.mxu0 0.0
        %2430 = vmatpush1.msra.mxu0 %v546
        %2431 = vmatprep.subr.mxu0 0.0
        %2432 = vmatpush1.msra.mxu0 %v547
        %2433 = vmatprep.subr.mxu0 0.0
        %2434 = vmatpush1.msra.mxu0 %v548
        %2435 = vmatprep.subr.mxu0 0.0
        %2436 = vmatpush1.msra.mxu0 %v549
        %2437 = vmatprep.subr.mxu0 0.0
        %2438 = vmatpush1.msra.mxu0 %v550
        %2439 = vmatprep.subr.mxu0 0.0
        %2440 = vmatpush1.msra.mxu0 %v551
        %2441 = vmatprep.subr.mxu0 0.0
        %2442 = vmatpush1.msra.mxu0 %v552
        %2443 = vmatprep.subr.mxu0 0.0
        %2444 = vmatpush1.msra.mxu0 %v553
        %2445 = vmatprep.subr.mxu0 0.0
        %2446 = vmatpush1.msra.mxu0 %v554
        %2447 = vmatprep.subr.mxu0 0.0
        %2448 = vmatpush1.msra.mxu0 %v555
        %2449 = vmatprep.subr.mxu0 0.0
        %2450 = vmatpush1.msra.mxu0 %v556
        %2451 = vmatprep.subr.mxu0 0.0
        %2452 = vmatpush1.msra.mxu0 0.0
        %2453 = vmatprep.subr.mxu0 0.0
        %2454 = vmatpush1.msra.mxu0 0.0
        %2455 = vmatprep.subr.mxu0 0.0
        %2456 = vmatpush1.msra.mxu0 0.0
        %2457 = vmatprep.subr.mxu0 0.0
        %2458 = vmatpush1.msra.mxu0 0.0
        %2459 = vmatprep.subr.mxu0 0.0
        %2460 = vmatpush1.msra.mxu0 0.0
        %2461 = vmatprep.subr.mxu0 0.0
        %2462 = vmatpush1.msra.mxu0 0.0
        %2463 = vmatprep.subr.mxu0 0.0
        %2464 = vmatpush1.msra.mxu0 0.0
        %2465 = vmatprep.subr.mxu0 0.0
        %2466 = vmatpush1.msra.mxu0 0.0
        %2467 = vmatprep.subr.mxu0 0.0
        %2468 = vmatpush1.msra.mxu0 0.0
        %2469 = vmatprep.subr.mxu0 0.0
        %2470 = vmatpush1.msra.mxu0 0.0
        %2471 = vmatprep.subr.mxu0 0.0
        %2472 = vmatpush1.msra.mxu0 0.0
        %2473 = vmatprep.subr.mxu0 0.0
        %2474 = vmatpush1.msra.mxu0 0.0
        %2475 = vmatprep.subr.mxu0 0.0
        %2476 = vmatpush1.msra.mxu0 0.0
        %2477 = vmatprep.subr.mxu0 0.0
        %2478 = vmatpush1.msra.mxu0 0.0
        %2479 = vmatprep.subr.mxu0 0.0
        %2480 = vmatpush1.msra.mxu0 0.0
        %2481 = vmatprep.subr.mxu0 0.0
        %2482 = vmatpush1.msra.mxu0 0.0
        %2483 = vmatprep.mubr.f32.mxu0 0.0
        %2484 = vmatmul.mubr.f32.gmra.mrb[0].mxu0 %v2097
        %v2485 = vpop.f32.mrb[0].mxu0
        %v2486 = vadd.f32 0.0, %v2485
        %v2487 = vpop.f32.mrb[0].mxu0
        %2488 = vmatprep.mubr.f32.mxu0 0.0
        %2489 = vmatmul.mubr.f32.gmra.mrb[0].mxu0 %v2098
        %v2490 = vpop.f32.mrb[0].mxu0
        %v2491 = vadd.f32 0.0, %v2490
        %v2492 = vpop.f32.mrb[0].mxu0
        %2493 = vmatprep.mubr.f32.mxu0 0.0
        %2494 = vmatmul.mubr.f32.gmra.mrb[0].mxu0 %v2099
        %v2495 = vpop.f32.mrb[0].mxu0
        %v2496 = vadd.f32 0.0, %v2495
        %v2497 = vpop.f32.mrb[0].mxu0
        %2498 = vmatprep.mubr.f32.mxu0 0.0
        %2499 = vmatmul.mubr.f32.gmra.mrb[0].mxu0 %v2100
        %v2500 = vpop.f32.mrb[0].mxu0
        %v2501 = vadd.f32 0.0, %v2500
        %v2502 = vpop.f32.mrb[0].mxu0
        %2503 = vmatprep.mubr.f32.mxu0 0.0
        %2504 = vmatmul.mubr.f32.gmra.mrb[0].mxu0 %v2101
        %v2505 = vpop.f32.mrb[0].mxu0
        %v2506 = vadd.f32 0.0, %v2505
        %v2507 = vpop.f32.mrb[0].mxu0
        %2508 = vmatprep.mubr.f32.mxu0 0.0
        %2509 = vmatmul.mubr.f32.gmra.mrb[0].mxu0 %v2102
        %v2510 = vpop.f32.mrb[0].mxu0
        %v2511 = vadd.f32 0.0, %v2510
        %v2512 = vpop.f32.mrb[0].mxu0
        %2513 = vmatprep.mubr.f32.mxu0 0.0
        %2514 = vmatmul.mubr.f32.gmra.mrb[0].mxu0 %v2103
        %v2515 = vpop.f32.mrb[0].mxu0
        %v2516 = vadd.f32 0.0, %v2515
        %v2517 = vpop.f32.mrb[0].mxu0
        %2518 = vmatprep.mubr.f32.mxu0 0.0
        %2519 = vmatmul.mubr.f32.gmra.mrb[0].mxu0 %v2104
        %v2520 = vpop.f32.mrb[0].mxu0
        %v2521 = vadd.f32 0.0, %v2520
        %v2522 = vpop.f32.mrb[0].mxu0
        %2523 = vmatprep.mubr.f32.mxu0 0.0
        %2524 = vmatmul.mubr.f32.gmra.mrb[0].mxu0 %v2105
        %v2525 = vpop.f32.mrb[0].mxu0
        %v2526 = vadd.f32 0.0, %v2525
        %v2527 = vpop.f32.mrb[0].mxu0
        %2528 = vmatprep.mubr.f32.mxu0 0.0
        %2529 = vmatmul.mubr.f32.gmra.mrb[0].mxu0 %v2106
        %v2530 = vpop.f32.mrb[0].mxu0
        %v2531 = vadd.f32 0.0, %v2530
        %v2532 = vpop.f32.mrb[0].mxu0
        %2533 = vmatprep.mubr.f32.mxu0 0.0
        %2534 = vmatmul.mubr.f32.gmra.mrb[0].mxu0 %v2107
        %v2535 = vpop.f32.mrb[0].mxu0
        %v2536 = vadd.f32 0.0, %v2535
        %v2537 = vpop.f32.mrb[0].mxu0
        %2538 = vmatprep.mubr.f32.mxu0 0.0
        %2539 = vmatmul.mubr.f32.gmra.mrb[0].mxu0 %v2108
        %v2540 = vpop.f32.mrb[0].mxu0
        %v2541 = vadd.f32 0.0, %v2540
        %v2542 = vpop.f32.mrb[0].mxu0
        %2543 = vmatprep.mubr.f32.mxu0 0.0
        %2544 = vmatmul.mubr.f32.gmra.mrb[0].mxu0 %v2109
        %v2545 = vpop.f32.mrb[0].mxu0
        %v2546 = vadd.f32 0.0, %v2545
        %v2547 = vpop.f32.mrb[0].mxu0
        %2548 = vmatprep.mubr.f32.mxu0 0.0
        %2549 = vmatmul.mubr.f32.gmra.mrb[0].mxu0 %v2110
        %v2550 = vpop.f32.mrb[0].mxu0
        %v2551 = vadd.f32 0.0, %v2550
        %v2552 = vpop.f32.mrb[0].mxu0
        %2553 = vmatprep.mubr.f32.mxu0 0.0
        %2554 = vmatmul.mubr.f32.gmra.mrb[0].mxu0 %v2111
        %v2555 = vpop.f32.mrb[0].mxu0
        %v2556 = vadd.f32 0.0, %v2555
        %v2557 = vpop.f32.mrb[0].mxu0
        %2558 = vmatprep.mubr.f32.mxu0 0.0
        %2559 = vmatmul.mubr.f32.gmra.mrb[0].mxu0 %v2112
        %v2560 = vpop.f32.mrb[0].mxu0
        %v2561 = vadd.f32 0.0, %v2560
        %v2562 = vpop.f32.mrb[0].mxu0
        %2563 = vdwg.mxu0
        %2564 = vmatprep.subr.mxu0 0.0
        %2565 = vmatpush1.msra.mxu0 %v557
        %2566 = vmatprep.subr.mxu0 0.0
        %2567 = vmatpush1.msra.mxu0 %v558
        %2568 = vmatprep.subr.mxu0 0.0
        %2569 = vmatpush1.msra.mxu0 %v559
        %2570 = vmatprep.subr.mxu0 0.0
        %2571 = vmatpush1.msra.mxu0 %v560
        %2572 = vmatprep.subr.mxu0 0.0
        %2573 = vmatpush1.msra.mxu0 %v561
        %2574 = vmatprep.subr.mxu0 0.0
        %2575 = vmatpush1.msra.mxu0 %v562
        %2576 = vmatprep.subr.mxu0 0.0
        %2577 = vmatpush1.msra.mxu0 %v563
        %2578 = vmatprep.subr.mxu0 0.0
        %2579 = vmatpush1.msra.mxu0 %v564
        %2580 = vmatprep.subr.mxu0 0.0
        %2581 = vmatpush1.msra.mxu0 %v565
        %2582 = vmatprep.subr.mxu0 0.0
        %2583 = vmatpush1.msra.mxu0 %v566
        %2584 = vmatprep.subr.mxu0 0.0
        %2585 = vmatpush1.msra.mxu0 %v567
        %2586 = vmatprep.subr.mxu0 0.0
        %2587 = vmatpush1.msra.mxu0 %v568
        %2588 = vmatprep.subr.mxu0 0.0
        %2589 = vmatpush1.msra.mxu0 %v569
        %2590 = vmatprep.subr.mxu0 0.0
        %2591 = vmatpush1.msra.mxu0 %v570
        %2592 = vmatprep.subr.mxu0 0.0
        %2593 = vmatpush1.msra.mxu0 %v571
        %2594 = vmatprep.subr.mxu0 0.0
        %2595 = vmatpush1.msra.mxu0 %v572
        %2596 = vmatprep.subr.mxu0 0.0
        %2597 = vmatpush1.msra.mxu0 0.0
        %2598 = vmatprep.subr.mxu0 0.0
        %2599 = vmatpush1.msra.mxu0 0.0
        %2600 = vmatprep.subr.mxu0 0.0
        %2601 = vmatpush1.msra.mxu0 0.0
        %2602 = vmatprep.subr.mxu0 0.0
        %2603 = vmatpush1.msra.mxu0 0.0
        %2604 = vmatprep.subr.mxu0 0.0
        %2605 = vmatpush1.msra.mxu0 0.0
        %2606 = vmatprep.subr.mxu0 0.0
        %2607 = vmatpush1.msra.mxu0 0.0
        %2608 = vmatprep.subr.mxu0 0.0
        %2609 = vmatpush1.msra.mxu0 0.0
        %2610 = vmatprep.subr.mxu0 0.0
        %2611 = vmatpush1.msra.mxu0 0.0
        %2612 = vmatprep.subr.mxu0 0.0
        %2613 = vmatpush1.msra.mxu0 0.0
        %2614 = vmatprep.subr.mxu0 0.0
        %2615 = vmatpush1.msra.mxu0 0.0
        %2616 = vmatprep.subr.mxu0 0.0
        %2617 = vmatpush1.msra.mxu0 0.0
        %2618 = vmatprep.subr.mxu0 0.0
        %2619 = vmatpush1.msra.mxu0 0.0
        %2620 = vmatprep.subr.mxu0 0.0
        %2621 = vmatpush1.msra.mxu0 0.0
        %2622 = vmatprep.subr.mxu0 0.0
        %2623 = vmatpush1.msra.mxu0 0.0
        %2624 = vmatprep.subr.mxu0 0.0
        %2625 = vmatpush1.msra.mxu0 0.0
        %2626 = vmatprep.subr.mxu0 0.0
        %2627 = vmatpush1.msra.mxu0 0.0
        %2628 = vmatprep.mubr.f32.mxu0 0.0
        %2629 = vmatmul.mubr.f32.gmra.mrb[0].mxu0 %v2113
        %v2630 = vpop.f32.mrb[0].mxu0
        %v2631 = vadd.f32 0.0, %v2630
        %v2632 = vpop.f32.mrb[0].mxu0
        %2633 = vmatprep.mubr.f32.mxu0 0.0
        %2634 = vmatmul.mubr.f32.gmra.mrb[0].mxu0 %v2114
        %v2635 = vpop.f32.mrb[0].mxu0
        %v2636 = vadd.f32 0.0, %v2635
        %v2637 = vpop.f32.mrb[0].mxu0
        %2638 = vmatprep.mubr.f32.mxu0 0.0
        %2639 = vmatmul.mubr.f32.gmra.mrb[0].mxu0 %v2115
        %v2640 = vpop.f32.mrb[0].mxu0
        %v2641 = vadd.f32 0.0, %v2640
        %v2642 = vpop.f32.mrb[0].mxu0
        %2643 = vmatprep.mubr.f32.mxu0 0.0
        %2644 = vmatmul.mubr.f32.gmra.mrb[0].mxu0 %v2116
        %v2645 = vpop.f32.mrb[0].mxu0
        %v2646 = vadd.f32 0.0, %v2645
        %v2647 = vpop.f32.mrb[0].mxu0
        %2648 = vmatprep.mubr.f32.mxu0 0.0
        %2649 = vmatmul.mubr.f32.gmra.mrb[0].mxu0 %v2117
        %v2650 = vpop.f32.mrb[0].mxu0
        %v2651 = vadd.f32 0.0, %v2650
        %v2652 = vpop.f32.mrb[0].mxu0
        %2653 = vmatprep.mubr.f32.mxu0 0.0
        %2654 = vmatmul.mubr.f32.gmra.mrb[0].mxu0 %v2118
        %v2655 = vpop.f32.mrb[0].mxu0
        %v2656 = vadd.f32 0.0, %v2655
        %v2657 = vpop.f32.mrb[0].mxu0
        %2658 = vmatprep.mubr.f32.mxu0 0.0
        %2659 = vmatmul.mubr.f32.gmra.mrb[0].mxu0 %v2119
        %v2660 = vpop.f32.mrb[0].mxu0
        %v2661 = vadd.f32 0.0, %v2660
        %v2662 = vpop.f32.mrb[0].mxu0
        %2663 = vmatprep.mubr.f32.mxu0 0.0
        %2664 = vmatmul.mubr.f32.gmra.mrb[0].mxu0 %v2120
        %v2665 = vpop.f32.mrb[0].mxu0
        %v2666 = vadd.f32 0.0, %v2665
        %v2667 = vpop.f32.mrb[0].mxu0
        %2668 = vmatprep.mubr.f32.mxu0 0.0
        %2669 = vmatmul.mubr.f32.gmra.mrb[0].mxu0 %v2121
        %v2670 = vpop.f32.mrb[0].mxu0
        %v2671 = vadd.f32 0.0, %v2670
        %v2672 = vpop.f32.mrb[0].mxu0
        %2673 = vmatprep.mubr.f32.mxu0 0.0
        %2674 = vmatmul.mubr.f32.gmra.mrb[0].mxu0 %v2122
        %v2675 = vpop.f32.mrb[0].mxu0
        %v2676 = vadd.f32 0.0, %v2675
        %v2677 = vpop.f32.mrb[0].mxu0
        %2678 = vmatprep.mubr.f32.mxu0 0.0
        %2679 = vmatmul.mubr.f32.gmra.mrb[0].mxu0 %v2123
        %v2680 = vpop.f32.mrb[0].mxu0
        %v2681 = vadd.f32 0.0, %v2680
        %v2682 = vpop.f32.mrb[0].mxu0
        %2683 = vmatprep.mubr.f32.mxu0 0.0
        %2684 = vmatmul.mubr.f32.gmra.mrb[0].mxu0 %v2124
        %v2685 = vpop.f32.mrb[0].mxu0
        %v2686 = vadd.f32 0.0, %v2685
        %v2687 = vpop.f32.mrb[0].mxu0
        %2688 = vmatprep.mubr.f32.mxu0 0.0
        %2689 = vmatmul.mubr.f32.gmra.mrb[0].mxu0 %v2125
        %v2690 = vpop.f32.mrb[0].mxu0
        %v2691 = vadd.f32 0.0, %v2690
        %v2692 = vpop.f32.mrb[0].mxu0
        %2693 = vmatprep.mubr.f32.mxu0 0.0
        %2694 = vmatmul.mubr.f32.gmra.mrb[0].mxu0 %v2126
        %v2695 = vpop.f32.mrb[0].mxu0
        %v2696 = vadd.f32 0.0, %v2695
        %v2697 = vpop.f32.mrb[0].mxu0
        %2698 = vmatprep.mubr.f32.mxu0 0.0
        %2699 = vmatmul.mubr.f32.gmra.mrb[0].mxu0 %v2127
        %v2700 = vpop.f32.mrb[0].mxu0
        %v2701 = vadd.f32 0.0, %v2700
        %v2702 = vpop.f32.mrb[0].mxu0
        %2703 = vmatprep.mubr.f32.mxu0 0.0
        %2704 = vmatmul.mubr.f32.gmra.mrb[0].mxu0 %v2128
        %v2705 = vpop.f32.mrb[0].mxu0
        %v2706 = vadd.f32 0.0, %v2705
        %v2707 = vpop.f32.mrb[0].mxu0
        %2708 = vdwg.mxu0
        %2709 = vst [vmem:[%s375] sm:$0xff] %v2196
        %2710 = vst [vmem:[%s375 + $0x8] sm:$0xff] %v2201
        %2711 = vst [vmem:[%s375 + $0x10] sm:$0xff] %v2206
        %2712 = vst [vmem:[%s375 + $0x18] sm:$0xff] %v2211
        %2713 = vst [vmem:[%s375 + $0x20] sm:$0xff] %v2216
        %2714 = vst [vmem:[%s375 + $0x28] sm:$0xff] %v2221
        %2715 = vst [vmem:[%s375 + $0x30] sm:$0xff] %v2226
        %2716 = vst [vmem:[%s375 + $0x38] sm:$0xff] %v2231
        %2717 = vst [vmem:[%s375 + $0x40] sm:$0xff] %v2236
        %2718 = vst [vmem:[%s375 + $0x48] sm:$0xff] %v2241
        %2719 = vst [vmem:[%s375 + $0x50] sm:$0xff] %v2246
        %2720 = vst [vmem:[%s375 + $0x58] sm:$0xff] %v2251
        %2721 = vst [vmem:[%s375 + $0x60] sm:$0xff] %v2256
        %2722 = vst [vmem:[%s375 + $0x68] sm:$0xff] %v2261
        %2723 = vst [vmem:[%s375 + $0x70] sm:$0xff] %v2266
        %2724 = vst [vmem:[%s375 + $0x78] sm:$0xff] %v2271
        %2725 = vst [vmem:[%s375 + $0x80] sm:$0xff] %v2341
        %2726 = vst [vmem:[%s375 + $0x88] sm:$0xff] %v2346
        %2727 = vst [vmem:[%s375 + $0x90] sm:$0xff] %v2351
        %2728 = vst [vmem:[%s375 + $0x98] sm:$0xff] %v2356
        %2729 = vst [vmem:[%s375 + $0xa0] sm:$0xff] %v2361
        %2730 = vst [vmem:[%s375 + $0xa8] sm:$0xff] %v2366
        %2731 = vst [vmem:[%s375 + $0xb0] sm:$0xff] %v2371
        %2732 = vst [vmem:[%s375 + $0xb8] sm:$0xff] %v2376
        %2733 = vst [vmem:[%s375 + $0xc0] sm:$0xff] %v2381
        %2734 = vst [vmem:[%s375 + $0xc8] sm:$0xff] %v2386
        %2735 = vst [vmem:[%s375 + $0xd0] sm:$0xff] %v2391
        %2736 = vst [vmem:[%s375 + $0xd8] sm:$0xff] %v2396
        %2737 = vst [vmem:[%s375 + $0xe0] sm:$0xff] %v2401
        %2738 = vst [vmem:[%s375 + $0xe8] sm:$0xff] %v2406
        %2739 = vst [vmem:[%s375 + $0xf0] sm:$0xff] %v2411
        %2740 = vst [vmem:[%s375 + $0xf8] sm:$0xff] %v2416
        %2741 = vst [vmem:[%s375 + $0x100] sm:$0xff] %v2486
        %2742 = vst [vmem:[%s375 + $0x108] sm:$0xff] %v2491
        %2743 = vst [vmem:[%s375 + $0x110] sm:$0xff] %v2496
        %2744 = vst [vmem:[%s375 + $0x118] sm:$0xff] %v2501
        %2745 = vst [vmem:[%s375 + $0x120] sm:$0xff] %v2506
        %2746 = vst [vmem:[%s375 + $0x128] sm:$0xff] %v2511
        %2747 = vst [vmem:[%s375 + $0x130] sm:$0xff] %v2516
        %2748 = vst [vmem:[%s375 + $0x138] sm:$0xff] %v2521
        %2749 = vst [vmem:[%s375 + $0x140] sm:$0xff] %v2526
        %2750 = vst [vmem:[%s375 + $0x148] sm:$0xff] %v2531
        %2751 = vst [vmem:[%s375 + $0x150] sm:$0xff] %v2536
        %2752 = vst [vmem:[%s375 + $0x158] sm:$0xff] %v2541
        %2753 = vst [vmem:[%s375 + $0x160] sm:$0xff] %v2546
        %2754 = vst [vmem:[%s375 + $0x168] sm:$0xff] %v2551
        %2755 = vst [vmem:[%s375 + $0x170] sm:$0xff] %v2556
        %2756 = vst [vmem:[%s375 + $0x178] sm:$0xff] %v2561
        %2757 = vst [vmem:[%s375 + $0x180] sm:$0xff] %v2631
        %2758 = vst [vmem:[%s375 + $0x188] sm:$0xff] %v2636
        %2759 = vst [vmem:[%s375 + $0x190] sm:$0xff] %v2641
        %2760 = vst [vmem:[%s375 + $0x198] sm:$0xff] %v2646
        %2761 = vst [vmem:[%s375 + $0x1a0] sm:$0xff] %v2651
        %2762 = vst [vmem:[%s375 + $0x1a8] sm:$0xff] %v2656
        %2763 = vst [vmem:[%s375 + $0x1b0] sm:$0xff] %v2661
        %2764 = vst [vmem:[%s375 + $0x1b8] sm:$0xff] %v2666
        %2765 = vst [vmem:[%s375 + $0x1c0] sm:$0xff] %v2671
        %2766 = vst [vmem:[%s375 + $0x1c8] sm:$0xff] %v2676
        %2767 = vst [vmem:[%s375 + $0x1d0] sm:$0xff] %v2681
        %2768 = vst [vmem:[%s375 + $0x1d8] sm:$0xff] %v2686
        %2769 = vst [vmem:[%s375 + $0x1e0] sm:$0xff] %v2691
        %2770 = vst [vmem:[%s375 + $0x1e8] sm:$0xff] %v2696
        %2771 = vst [vmem:[%s375 + $0x1f0] sm:$0xff] %v2701
        %2772 = vst [vmem:[%s375 + $0x1f8] sm:$0xff] %v2706
        %s2773 = sand.u32 %s159, 1
        %s2774 = scalar_lea.sflag [#allocation4], %s2773
        %s2775 = sand.u32 %s159, 1
        %s2776 = smul.addr %s2775, 512
        %s2777 = scalar_lea.vmem [#allocation11], %s2776
        // Predicated region
        $region61: #{tpu_custom_call.1} parent=39 // pred_check
          %p2778 = pneg %p169
        $region62: #{tpu_custom_call.1} parent=39 // pred_check_branch
          %2780 = sbr.rel (%p2778) target = $region64
        $region63: #{tpu_custom_call.1} parent=39 // pred_region
          %s2781 = smul.u32 4, %s26
          %s2783 = ssub.s32 8192, 8192
          %2784 = vsyncadd %s2774, %s2783
          %s2785 = smul.addr %s2781, 16
          %s2786 = smul.addr %s2785, 128
          %s2787 = scalar_lea.hbm %s5, %s2786
          %s2788 = sshll.u32 %s2777, 4
          %s2789 = int_to_ptr.vmem [resolvable:$true] %s2788
          %2794 = dma.vmem_to_hbm [thread:$0]  %s2789, 8192, %s2787, %s2774, 128, 128, 8
        $region64: #{tpu_custom_call.1} parent=39 // pred_fallthru
          _
      $region40: #{tpu_custom_call.1} parent=5 // pred_fallthru
        _
      %p2795 = scmp.le.s32.totalorder 2, %s21
      // Predicated region
      $region65: #{tpu_custom_call.1} parent=5 // pred_check
        %p2796 = pneg %p2795
      $region66: #{tpu_custom_call.1} parent=5 // pred_check_branch
        %2798 = sbr.rel (%p2796) target = $region68
      $region67: #{tpu_custom_call.1} parent=5 // pred_region
        %s2799 = ssub.s32 %s21, 2
        // Predicated region
        $region69: #{tpu_custom_call.1} parent=67 // pred_check
          %p2800 = pneg %p175
        $region70: #{tpu_custom_call.1} parent=67 // pred_check_branch
          %2802 = sbr.rel (%p2800) target = $region72
        $region71: #{tpu_custom_call.1} parent=67 // pred_region
          %s2803 = sand.u32 %s160, 1
          %s2804 = scalar_lea.sflag [#allocation4], %s2803
          %s2805 = sand.u32 %s160, 1
          %s2806 = smul.addr %s2805, 512
          %s2807 = scalar_lea.vmem [#allocation11], %s2806
          %2808 = dma.done %s2804, 8192
        $region72: #{tpu_custom_call.1} parent=67 // pred_fallthru
          _
      $region68: #{tpu_custom_call.1} parent=5 // pred_fallthru
        _
    $region6: #{tpu_custom_call.1} parent=1 // loop_footer
      %s25 = sadd.s32 1, %s21
    $region7: #{tpu_custom_call.1} parent=1 // loop_footer_branch
      %20 = sbr.rel target = $region3
    $region8: #{tpu_custom_call.1} parent=1 // loop_exit
      _
    %2809 = vsyncpa [#allocation3], 1
    %s2810 = scalar_lea.sflag [#allocation3], 1
    %2811 = vsyncpa %s2810, 1
    %2812 = vsyncpa [#allocation6], 1
    %s2813 = scalar_lea.sflag [#allocation6], 1
    %2814 = vsyncpa %s2813, 1
    %2815 = vsyncpa [#allocation9], 1
    %2816 = vsyncpa [#allocation4], 1
    %s2817 = scalar_lea.sflag [#allocation4], 1
    %2818 = vsyncpa %s2817, 1

</llo_original>
